<compile_context>
chip_gen: v7x
topology: tpu7x:2x2x1
jax: 0.10.0
libtpu: 0.0.40
codegen_flags: <defaults>
</compile_context>

<pallas_src>
import jax
import jax.numpy as jnp
import numpy as np
from jax import lax
from jax.experimental import pallas as pl
from jax.experimental.pallas import tpu as pltpu

B = 2               # demo batch size
L0 = 64             # input length (-> 32 -> 16 after the two maxpools)
C1 = 12             # conv1 output channels
C2 = 24             # conv2 output channels
L1 = L0 // 2        # 32
L2 = L1 // 2        # 16
NUM_CLASSES = 37
OUT_PAD = 128       # lane-dense output slab, sliced back to 37 in the wrapper

HALF1 = C1 * L1     # 384 = 3*128 (lane-aligned slab)
H1 = 2 * HALF1      # 768
HALF2 = C2 * L2     # 384
H2 = 2 * HALF2      # 768

_HIGHEST = lax.Precision.HIGHEST   # reference only


# ------------------------------ Pallas kernel -------------------------------
def morse_kernel(x_ref, w1_ref, b1_ref, w2_ref, b2_ref, fcw_ref, fcb_ref, out_ref):
    """One batch tile.  Conv outputs are laid out with even positions in lanes
    [0, 384) and odd positions in [384, 768), so each MaxPool1d(2,2) is a plain
    elementwise max of two 128-aligned lane slabs (no roll, no zero rows)."""
    # layer1: Conv1d(1,12,3,pad=1) as a Toeplitz matmul (bf16 @ bf16 -> f32 acc).
    h1 = jnp.dot(x_ref[...], w1_ref[...],
                 preferred_element_type=jnp.float32)                  # (Bt, 768)
    h1 = jnp.maximum(h1 + b1_ref[...], 0.0)

    # MaxPool1d(2,2): even-lane slab vs odd-lane slab.
    p1 = jnp.maximum(h1[:, :HALF1], h1[:, HALF1:]).astype(w2_ref.dtype)   # (Bt, 384)

    # layer2: Conv1d(12,24,3,pad=1) as one dense matmul on the pooled layout.
    h2 = jnp.dot(p1, w2_ref[...],
                 preferred_element_type=jnp.float32)                  # (Bt, 768)
    h2 = jnp.maximum(h2 + b2_ref[...], 0.0)

    # MaxPool1d(2,2) again.
    p2 = jnp.maximum(h2[:, :HALF2], h2[:, HALF2:]).astype(fcw_ref.dtype)  # (Bt, 384)

    # flatten + Linear(384, 37): p2's lane index already equals PyTorch's flatten
    # index (c*16 + p); output lane-padded to 128 for an unmasked store.
    out_ref[...] = (jnp.dot(p2, fcw_ref[...],
                            preferred_element_type=jnp.float32)
                    + fcb_ref[...])                                    # (Bt, 128)


# ------------------------ weight preparation (glue) --------------------------
def _conv_band(n):
    """bands[k][i, j] = 1.0 iff i == j + k - 1 (input pos i feeds output pos j, tap k)."""
    return jnp.stack([jnp.eye(n, k=1), jnp.eye(n), jnp.eye(n, k=-1)], axis=0)


def prepare_weights(params, dtype=jnp.bfloat16):
    """Fold conv taps, pooling de-interleave, flatten and the fc into three dense
    matmul operands.  Pure placement / elementwise work (exact, no matmuls).

    Lane layouts:
      h1 lanes: [c*32 + j  | even positions 2j]   then [+384 | odd positions 2j+1]
      p1 lanes:  c*32 + j          (pool1 output position j, channel c)
      h2 lanes: [c*16 + p  | even] then [+384 | odd]
      p2 lanes:  c*16 + p          == PyTorch flatten index of (B, 24, 16)
    """
    w1, b1, w2, b2, fcw, fcb = (jnp.asarray(p, jnp.float32) for p in params)

    # conv1: x (B, 64) @ M1 (64, 768), output columns de-interleaved by parity.
    t1 = _conv_band(L0)                                              # (3, L0, L0)
    M1 = (t1[:, :, None, :] * w1[:, 0, :].T[:, None, :, None]).sum(0)  # (L0, C1, L0)
    M1 = M1.reshape(L0, C1, L1, 2)                                   # l_out = 2*j + par
    M1 = jnp.concatenate([M1[..., 0].reshape(L0, HALF1),
                          M1[..., 1].reshape(L0, HALF1)], axis=-1)   # (64, 768)
    b1h = jnp.repeat(b1, L1)
    b1v = jnp.concatenate([b1h, b1h]).reshape(1, H1)

    # conv2: p1 (B, 384) @ M2 (384, 768), dense (no zero rows), same de-interleave.
    t2 = _conv_band(L1)                                              # (3, L1, L1)
    M2 = (t2[:, None, :, None, :]
          * jnp.transpose(w2, (2, 1, 0))[:, :, None, :, None]).sum(0)  # (C1,L1,C2,L1)
    M2 = M2.reshape(C1, L1, C2, L2, 2)                               # l_out = 2*p + par
    M2 = jnp.concatenate([M2[..., 0].reshape(HALF1, HALF2),
                          M2[..., 1].reshape(HALF1, HALF2)], axis=-1)   # (384, 768)
    b2h = jnp.repeat(b2, L2)
    b2v = jnp.concatenate([b2h, b2h]).reshape(1, H2)

    # fc: p2's lane index equals PyTorch's flatten index, so Wfc is just fcw.T,
    # lane-padded to 128 output columns for a dense store.
    Wfc = jnp.pad(fcw.T, ((0, 0), (0, OUT_PAD - NUM_CLASSES)))       # (384, 128)
    fcbv = jnp.pad(fcb, (0, OUT_PAD - NUM_CLASSES)).reshape(1, OUT_PAD)

    # Weights in bf16 (single MXU pass, half the HBM/VMEM traffic); biases stay
    # f32 and are added to the f32 accumulators.
    return (M1.astype(dtype), b1v, M2.astype(dtype), b2v, Wfc.astype(dtype), fcbv)


# -------------------------------- wrapper ------------------------------------
def _round_up(n, m):
    return -(-n // m) * m


def morse_forward(x, params, *, block_b=None, compute_dtype=jnp.bfloat16):
    """x: (B, 1, L0) float32 (PyTorch NCL).  Returns (B, NUM_CLASSES) float32."""
    bsz = x.shape[0]
    M1, b1v, M2, b2v, Wfc, fcbv = prepare_weights(params, dtype=compute_dtype)

    if block_b is None:
        if bsz <= 256:
            # Small batches: one tile, padded to a sublane multiple (>=8 rows).
            block_b = max(8, _round_up(bsz, 8))
        else:
            # Large batches: 256-row multiples (full-height MXU passes on
            # v6e/v7x), >=2 grid tiles so the "parallel" axis feeds both v7x
            # TensorCores, capped at 1024 rows to stay VMEM-safe on v7x.
            # (On v5e/v6e with 128 MiB VMEM, callers may pass block_b=2048.)
            block_b = min(1024, _round_up(_round_up(bsz, 2) // 2, 256))

    bpad = _round_up(bsz, block_b)                       # full tiles only
    xin = x[:, 0, :].astype(compute_dtype)               # (B, 64) -> bf16
    if bpad != bsz:
        xin = jnp.pad(xin, ((0, bpad - bsz), (0, 0)))
    grid = (bpad // block_b,)

    def whole(a):
        # Constant index_map => the block never changes across the grid, so
        # Pallas does not re-DMA it per step.  With bf16 + the de-interleaved
        # K=384 layout the whole weight set is <1 MiB, so the reviewer's
        # pl.Buffered(1) suggestion would save <1 MiB of VMEM; omitted to stay
        # on the default (well-tested) pipeline path.
        return pl.BlockSpec(a.shape, lambda i: (0, 0))

    flops = 2 * bpad * (L0 * H1 + HALF1 * H2 + HALF2 * OUT_PAD)
    bytes_accessed = (
        xin.size * 2
        + (M1.size + M2.size + Wfc.size) * 2
        + (b1v.size + b2v.size + fcbv.size) * 4
        + bpad * OUT_PAD * 4)

    out = pl.pallas_call(
        morse_kernel,
        out_shape=jax.ShapeDtypeStruct((bpad, OUT_PAD), jnp.float32),
        grid=grid,
        in_specs=[pl.BlockSpec((block_b, L0), lambda i: (i, 0)),
                  whole(M1), whole(b1v), whole(M2), whole(b2v),
                  whole(Wfc), whole(fcbv)],
        out_specs=pl.BlockSpec((block_b, OUT_PAD), lambda i: (i, 0)),
        compiler_params=pltpu.CompilerParams(
            dimension_semantics=("parallel",),      # batch tiles across v7x's 2 TCs
            vmem_limit_bytes=40 * 1024 * 1024),     # safe on v5e/v6e/v7x
        cost_estimate=pl.CostEstimate(flops=flops, transcendentals=0,
                                      bytes_accessed=bytes_accessed),
    )(xin, M1, b1v, M2, b2v, Wfc, fcbv)
    return out[:bsz, :NUM_CLASSES]


# ---------------------------- pure-JAX reference -----------------------------
def _ref_conv1d_same(x, w, b):
    # x: (B, Cin, L), w: (Cout, Cin, 3), b: (Cout,)
    L = x.shape[2]
    xp = jnp.pad(x, ((0, 0), (0, 0), (1, 1)))
    y = (jnp.einsum('bcl,oc->bol', xp[:, :, 0:L],     w[:, :, 0], precision=_HIGHEST)
         + jnp.einsum('bcl,oc->bol', xp[:, :, 1:L+1], w[:, :, 1], precision=_HIGHEST)
         + jnp.einsum('bcl,oc->bol', xp[:, :, 2:L+2], w[:, :, 2], precision=_HIGHEST)
         + b[None, :, None])
    return y


def ref_forward(x, params):
    w1, b1, w2, b2, fcw, fcb = params
    bsz = x.shape[0]
    y = jax.nn.relu(_ref_conv1d_same(x, w1, b1))
    y = jnp.max(y.reshape(bsz, C1, L0 // 2, 2), axis=-1)
    y = jax.nn.relu(_ref_conv1d_same(y, w2, b2))
    y = jnp.max(y.reshape(bsz, C2, L0 // 4, 2), axis=-1)
    y = y.reshape(bsz, -1)                  # (B, C2*L2), flatten index = c*16 + p
    return jnp.dot(y, fcw.T, precision=_HIGHEST) + fcb[None, :]


def init_params(key):
    k1, k2, k3, k4, k5 = jax.random.split(key, 5)
    # deterministic synthetic init (shapes match the PyTorch module)
    w1 = jax.random.uniform(k1, (C1, 1, 3), jnp.float32, -1.0, 1.0) / np.sqrt(1 * 3)
    b1 = jax.random.uniform(k2, (C1,), jnp.float32, -1.0, 1.0) / np.sqrt(1 * 3)
    w2 = jax.random.uniform(k3, (C2, C1, 3), jnp.float32, -1.0, 1.0) / np.sqrt(C1 * 3)
    b2 = jax.random.uniform(k4, (C2,), jnp.float32, -1.0, 1.0) / np.sqrt(C1 * 3)
    bound = np.sqrt(6.0 / (L2 * C2 + NUM_CLASSES))          # xavier_uniform_
    fcw = jax.random.uniform(k5, (NUM_CLASSES, L2 * C2), jnp.float32, -bound, bound)
    fcb = jnp.zeros((NUM_CLASSES,), jnp.float32)
    return (w1, b1, w2, b2, fcw, fcb)


if __name__ == "__main__":
    key = jax.random.PRNGKey(0)
    kp, kx = jax.random.split(key)
    params = init_params(kp)
    x = jax.random.normal(kx, (B, 1, L0), jnp.float32)      # PyTorch-style NCL

    out = jax.block_until_ready(morse_forward(x, params))
    ref = jax.block_until_ready(ref_forward(x, params))

    assert out.shape == (B, NUM_CLASSES)
    # bf16 operands with f32 accumulation vs a full-f32 HIGHEST reference:
    # end-to-end error is ~1e-3..1e-2; a layout/indexing bug would be O(1).
    np.testing.assert_allclose(np.asarray(out), np.asarray(ref),
                               rtol=2e-2, atol=2e-2)
    print("KERNEL_OK")
</pallas_src>

<mosaic_0001>
module attributes {stable_mosaic.version = 11 : i64} {
  func.func @morse_kernel(%arg0: i32, %arg1: memref<8x64xbf16, #tpu.memory_space<vmem>>, %arg2: memref<64x768xbf16, #tpu.memory_space<vmem>>, %arg3: memref<1x768xf32, #tpu.memory_space<vmem>>, %arg4: memref<384x768xbf16, #tpu.memory_space<vmem>>, %arg5: memref<1x768xf32, #tpu.memory_space<vmem>>, %arg6: memref<384x128xbf16, #tpu.memory_space<vmem>>, %arg7: memref<1x128xf32, #tpu.memory_space<vmem>>, %arg8: memref<8x128xf32, #tpu.memory_space<vmem>>) attributes {dimension_semantics = [#tpu.dimension_semantics<parallel>], iteration_bounds = array<i64: 1>, scalar_prefetch = 0 : i64, scratch_operands = 0 : i64, tpu.core_type = #tpu.core_type<tc>, window_params = [{transform_indices = @transform_0, window_bounds = array<i64: 8, 64>}, {pipeline_mode = #tpu.pipeline_mode<synchronous>, transform_indices = @transform_1, window_bounds = array<i64: 64, 768>}, {pipeline_mode = #tpu.pipeline_mode<synchronous>, transform_indices = @transform_2, window_bounds = array<i64: 1, 768>}, {pipeline_mode = #tpu.pipeline_mode<synchronous>, transform_indices = @transform_3, window_bounds = array<i64: 384, 768>}, {pipeline_mode = #tpu.pipeline_mode<synchronous>, transform_indices = @transform_4, window_bounds = array<i64: 1, 768>}, {pipeline_mode = #tpu.pipeline_mode<synchronous>, transform_indices = @transform_5, window_bounds = array<i64: 384, 128>}, {pipeline_mode = #tpu.pipeline_mode<synchronous>, transform_indices = @transform_6, window_bounds = array<i64: 1, 128>}, {transform_indices = @transform_7, window_bounds = array<i64: 8, 128>}]} {
    %c0 = arith.constant 0 : index
    %c0_0 = arith.constant 0 : index
    %0 = vector.load %arg1[%c0, %c0_0] : memref<8x64xbf16, #tpu.memory_space<vmem>>, vector<8x64xbf16>
    %c0_1 = arith.constant 0 : index
    %c0_2 = arith.constant 0 : index
    %1 = vector.load %arg2[%c0_1, %c0_2] : memref<64x768xbf16, #tpu.memory_space<vmem>>, vector<64x768xbf16>
    %cst = arith.constant dense<0.000000e+00> : vector<8x768xf32>
    %2 = tpu.matmul %0, %1, %cst {dimension_numbers = #tpu.dot_dimension_numbers<[1], [0], [0], [1], [0, 0, 1, 1], [], []>} : vector<8x64xbf16>, vector<64x768xbf16>, vector<8x768xf32> -> vector<8x768xf32>
    %c0_3 = arith.constant 0 : index
    %c0_4 = arith.constant 0 : index
    %3 = vector.load %arg3[%c0_3, %c0_4] : memref<1x768xf32, #tpu.memory_space<vmem>>, vector<1x768xf32>
    %4 = vector.broadcast %3 : vector<1x768xf32> to vector<8x768xf32>
    %5 = arith.addf %2, %4 : vector<8x768xf32>
    %cst_5 = arith.constant 0.000000e+00 : f32
    %6 = vector.broadcast %cst_5 : f32 to vector<8x768xf32>
    %7 = arith.maximumf %5, %6 : vector<8x768xf32>
    %8 = vector.extract_strided_slice %7 {offsets = [0, 0], sizes = [8, 384], strides = [1, 1]} : vector<8x768xf32> to vector<8x384xf32>
    %9 = vector.extract_strided_slice %7 {offsets = [0, 384], sizes = [8, 384], strides = [1, 1]} : vector<8x768xf32> to vector<8x384xf32>
    %10 = arith.maximumf %8, %9 : vector<8x384xf32>
    %11 = arith.truncf %10 : vector<8x384xf32> to vector<8x384xbf16>
    %c0_6 = arith.constant 0 : index
    %c0_7 = arith.constant 0 : index
    %12 = vector.load %arg4[%c0_6, %c0_7] : memref<384x768xbf16, #tpu.memory_space<vmem>>, vector<384x768xbf16>
    %cst_8 = arith.constant dense<0.000000e+00> : vector<8x768xf32>
    %13 = tpu.matmul %11, %12, %cst_8 {dimension_numbers = #tpu.dot_dimension_numbers<[1], [0], [0], [1], [0, 0, 1, 1], [], []>} : vector<8x384xbf16>, vector<384x768xbf16>, vector<8x768xf32> -> vector<8x768xf32>
    %c0_9 = arith.constant 0 : index
    %c0_10 = arith.constant 0 : index
    %14 = vector.load %arg5[%c0_9, %c0_10] : memref<1x768xf32, #tpu.memory_space<vmem>>, vector<1x768xf32>
    %15 = vector.broadcast %14 : vector<1x768xf32> to vector<8x768xf32>
    %16 = arith.addf %13, %15 : vector<8x768xf32>
    %cst_11 = arith.constant 0.000000e+00 : f32
    %17 = vector.broadcast %cst_11 : f32 to vector<8x768xf32>
    %18 = arith.maximumf %16, %17 : vector<8x768xf32>
    %19 = vector.extract_strided_slice %18 {offsets = [0, 0], sizes = [8, 384], strides = [1, 1]} : vector<8x768xf32> to vector<8x384xf32>
    %20 = vector.extract_strided_slice %18 {offsets = [0, 384], sizes = [8, 384], strides = [1, 1]} : vector<8x768xf32> to vector<8x384xf32>
    %21 = arith.maximumf %19, %20 : vector<8x384xf32>
    %22 = arith.truncf %21 : vector<8x384xf32> to vector<8x384xbf16>
    %c0_12 = arith.constant 0 : index
    %c0_13 = arith.constant 0 : index
    %23 = vector.load %arg6[%c0_12, %c0_13] : memref<384x128xbf16, #tpu.memory_space<vmem>>, vector<384x128xbf16>
    %cst_14 = arith.constant dense<0.000000e+00> : vector<8x128xf32>
    %24 = tpu.matmul %22, %23, %cst_14 {dimension_numbers = #tpu.dot_dimension_numbers<[1], [0], [0], [1], [0, 0, 1, 1], [], []>} : vector<8x384xbf16>, vector<384x128xbf16>, vector<8x128xf32> -> vector<8x128xf32>
    %c0_15 = arith.constant 0 : index
    %c0_16 = arith.constant 0 : index
    %25 = vector.load %arg7[%c0_15, %c0_16] : memref<1x128xf32, #tpu.memory_space<vmem>>, vector<1x128xf32>
    %26 = vector.broadcast %25 : vector<1x128xf32> to vector<8x128xf32>
    %27 = arith.addf %24, %26 : vector<8x128xf32>
    %c0_17 = arith.constant 0 : index
    %c0_18 = arith.constant 0 : index
    %28 = vector.load %arg8[%c0_17, %c0_18] : memref<8x128xf32, #tpu.memory_space<vmem>>, vector<8x128xf32>
    tpu.vector_store %arg8[%c0_17, %c0_18], %27 {strides = array<i32>} : memref<8x128xf32, #tpu.memory_space<vmem>>, vector<8x128xf32>,
    return
  }
  func.func @transform_0(%arg0: i32) -> (i32, i32) {
    %c0_i32 = arith.constant 0 : i32
    %c0_i32_0 = arith.constant 0 : i32
    return %arg0, %c0_i32 : i32, i32
  }
  func.func @transform_1(%arg0: i32) -> (i32, i32) {
    %c0_i32 = arith.constant 0 : i32
    %c0_i32_0 = arith.constant 0 : i32
    %c0_i32_1 = arith.constant 0 : i32
    return %c0_i32, %c0_i32_0 : i32, i32
  }
  func.func @transform_2(%arg0: i32) -> (i32, i32) {
    %c0_i32 = arith.constant 0 : i32
    %c0_i32_0 = arith.constant 0 : i32
    %c0_i32_1 = arith.constant 0 : i32
    return %c0_i32, %c0_i32_0 : i32, i32
  }
  func.func @transform_3(%arg0: i32) -> (i32, i32) {
    %c0_i32 = arith.constant 0 : i32
    %c0_i32_0 = arith.constant 0 : i32
    %c0_i32_1 = arith.constant 0 : i32
    return %c0_i32, %c0_i32_0 : i32, i32
  }
  func.func @transform_4(%arg0: i32) -> (i32, i32) {
    %c0_i32 = arith.constant 0 : i32
    %c0_i32_0 = arith.constant 0 : i32
    %c0_i32_1 = arith.constant 0 : i32
    return %c0_i32, %c0_i32_0 : i32, i32
  }
  func.func @transform_5(%arg0: i32) -> (i32, i32) {
    %c0_i32 = arith.constant 0 : i32
    %c0_i32_0 = arith.constant 0 : i32
    %c0_i32_1 = arith.constant 0 : i32
    return %c0_i32, %c0_i32_0 : i32, i32
  }
  func.func @transform_6(%arg0: i32) -> (i32, i32) {
    %c0_i32 = arith.constant 0 : i32
    %c0_i32_0 = arith.constant 0 : i32
    %c0_i32_1 = arith.constant 0 : i32
    return %c0_i32, %c0_i32_0 : i32, i32
  }
  func.func @transform_7(%arg0: i32) -> (i32, i32) {
    %c0_i32 = arith.constant 0 : i32
    %c0_i32_0 = arith.constant 0 : i32
    return %arg0, %c0_i32 : i32, i32
  }
}

</mosaic_0001>

<llo_original>
// kernel: tpu_custom_call.1
$region0: #{tpu_custom_call.1}
  #allocation0 [shape = 'u32[]', space=smem, size = 0x4, offset = 0x4, fixed_abs, tag = 'smem constant byte address 0x4 - core index']
  #allocation1 [shape = 'u32[144,128]{1,0:T(1,128)}', space=vmem, size = 0x12000, scoped, tag = 'internal scratch']
  %s0 = inlined_call_operand.hbm [shape: bf16[8,64], index: 0, kind: input, shape index: {}]
  %s1 = inlined_call_operand.hbm [shape: bf16[64,768], index: 1, kind: input, shape index: {}]
  %s2 = inlined_call_operand.vmem [shape: f32[1,768], index: 2, kind: input, shape index: {}]
  %s3 = inlined_call_operand.hbm [shape: bf16[384,768], index: 3, kind: input, shape index: {}]
  %s4 = inlined_call_operand.vmem [shape: f32[1,768], index: 4, kind: input, shape index: {}]
  %s5 = inlined_call_operand.hbm [shape: bf16[384,128], index: 5, kind: input, shape index: {}]
  %s6 = inlined_call_operand.vmem [shape: f32[1,128], index: 6, kind: input, shape index: {}]
  %s7 = inlined_call_operand.hbm [shape: f32[8,128], index: 7, kind: output, shape index: {}]
  %s8 = sld [smem:[#allocation0]]
  $region54: #{tpu_custom_call.1} parent=0
    _
  %s10 = ssub.s32 1, %s8
  %s11 = scalar_select 0, %s10, %s8
  $region1: #{tpu_custom_call.1} parent=0
    #allocation2 [shape = 'u8[2048]{0}', space=vmem, size = 0x800, scoped, tag = 'input window, operand 0, single buffered']
    #allocation3 [shape = 's32[1]{0}', space=sflag, size = 0x4, scoped, tag = 'scoped memory for tpu_custom_call.1']
    #allocation4 [shape = 's32[1]{0}', space=sflag, size = 0x4, scoped, tag = 'scoped memory for tpu_custom_call.1']
    #allocation5 [shape = 'u8[98304]{0}', space=vmem, size = 0x18000, scoped, tag = 'input window, operand 1, single buffered']
    #allocation6 [shape = 's32[1]{0}', space=sflag, size = 0x4, scoped, tag = 'scoped memory for tpu_custom_call.1']
    #allocation7 [shape = 'u8[589824]{0}', space=vmem, size = 0x90000, scoped, tag = 'input window, operand 3, single buffered']
    #allocation8 [shape = 'u8[98304]{0}', space=vmem, size = 0x18000, scoped, tag = 'input window, operand 5, single buffered']
    #allocation9 [shape = 's32[1]{0}', space=sflag, size = 0x4, scoped, tag = 'scoped memory for tpu_custom_call.1']
    #allocation10 [shape = 'u8[4096]{0}', space=vmem, size = 0x1000, scoped, tag = 'output window, operand 0, single buffered']
    %12 = vsyncpa [#allocation3], 0
    %13 = vsyncpa [#allocation6], 0
    %14 = vsyncpa [#allocation9], 0
    %15 = vsyncpa [#allocation4], 0
    // Predicated region
    $region2: #{tpu_custom_call.1} parent=1 // pred_check
      _
    $region3: #{tpu_custom_call.1} parent=1 // pred_check_branch
      %17 = sbr.rel (0) target = $region5
    $region4: #{tpu_custom_call.1} parent=1 // pred_region
      %s19 = ssub.s32 64, 64
      %20 = vsyncadd [#allocation3], %s19
      %s22 = sshll.u32 [#allocation2], 4
      %s23 = int_to_ptr.vmem [resolvable:$true] %s22
      %25 = dma.hbm_to_vmem [thread:$0]  %s0, 64, %s23, [#allocation3]
    $region5: #{tpu_custom_call.1} parent=1 // pred_fallthru
      _
    // Predicated region
    $region6: #{tpu_custom_call.1} parent=1 // pred_check
      _
    $region7: #{tpu_custom_call.1} parent=1 // pred_check_branch
      %27 = sbr.rel (0) target = $region9
    $region8: #{tpu_custom_call.1} parent=1 // pred_region
      %s29 = ssub.s32 3072, 3072
      %30 = vsyncadd [#allocation6], %s29
      %s31 = sshll.u32 [#allocation5], 4
      %s32 = int_to_ptr.vmem [resolvable:$true] %s31
      %37 = dma.hbm_to_vmem [thread:$0]  %s1, 3072, %s32, [#allocation6], 384, 384, 24
    $region9: #{tpu_custom_call.1} parent=1 // pred_fallthru
      _
    // Predicated region
    $region10: #{tpu_custom_call.1} parent=1 // pred_check
      _
    $region11: #{tpu_custom_call.1} parent=1 // pred_check_branch
      %39 = sbr.rel (0) target = $region13
    $region12: #{tpu_custom_call.1} parent=1 // pred_region
      _
    $region13: #{tpu_custom_call.1} parent=1 // pred_fallthru
      _
    // Predicated region
    $region14: #{tpu_custom_call.1} parent=1 // pred_check
      _
    $region15: #{tpu_custom_call.1} parent=1 // pred_check_branch
      %41 = sbr.rel (0) target = $region17
    $region16: #{tpu_custom_call.1} parent=1 // pred_region
      %s43 = ssub.s32 18432, 18432
      %44 = vsyncadd [#allocation6], %s43
      %s45 = sshll.u32 [#allocation7], 4
      %s46 = int_to_ptr.vmem [resolvable:$true] %s45
      %51 = dma.hbm_to_vmem [thread:$0]  %s3, 18432, %s46, [#allocation6], 384, 384, 24
    $region17: #{tpu_custom_call.1} parent=1 // pred_fallthru
      _
    // Predicated region
    $region18: #{tpu_custom_call.1} parent=1 // pred_check
      _
    $region19: #{tpu_custom_call.1} parent=1 // pred_check_branch
      %53 = sbr.rel (0) target = $region21
    $region20: #{tpu_custom_call.1} parent=1 // pred_region
      _
    $region21: #{tpu_custom_call.1} parent=1 // pred_fallthru
      _
    // Predicated region
    $region22: #{tpu_custom_call.1} parent=1 // pred_check
      _
    $region23: #{tpu_custom_call.1} parent=1 // pred_check_branch
      %55 = sbr.rel (0) target = $region25
    $region24: #{tpu_custom_call.1} parent=1 // pred_region
      %s57 = ssub.s32 3072, 3072
      %58 = vsyncadd [#allocation9], %s57
      %s59 = sshll.u32 [#allocation8], 4
      %s60 = int_to_ptr.vmem [resolvable:$true] %s59
      %65 = dma.hbm_to_vmem [thread:$0]  %s5, 3072, %s60, [#allocation9], 64, 64, 4
    $region25: #{tpu_custom_call.1} parent=1 // pred_fallthru
      _
    // Predicated region
    $region26: #{tpu_custom_call.1} parent=1 // pred_check
      _
    $region27: #{tpu_custom_call.1} parent=1 // pred_check_branch
      %67 = sbr.rel (0) target = $region29
    $region28: #{tpu_custom_call.1} parent=1 // pred_region
      _
    $region29: #{tpu_custom_call.1} parent=1 // pred_fallthru
      _
    // Predicated region
    $region30: #{tpu_custom_call.1} parent=1 // pred_check
      _
    $region31: #{tpu_custom_call.1} parent=1 // pred_check_branch
      %69 = sbr.rel (0) target = $region33
    $region32: #{tpu_custom_call.1} parent=1 // pred_region
      %70 = dma.done [#allocation3], 64
    $region33: #{tpu_custom_call.1} parent=1 // pred_fallthru
      _
    // Predicated region
    $region34: #{tpu_custom_call.1} parent=1 // pred_check
      _
    $region35: #{tpu_custom_call.1} parent=1 // pred_check_branch
      %72 = sbr.rel (0) target = $region37
    $region36: #{tpu_custom_call.1} parent=1 // pred_region
      %73 = dma.done [#allocation6], 3072
    $region37: #{tpu_custom_call.1} parent=1 // pred_fallthru
      _
    // Predicated region
    $region38: #{tpu_custom_call.1} parent=1 // pred_check
      _
    $region39: #{tpu_custom_call.1} parent=1 // pred_check_branch
      %75 = sbr.rel (0) target = $region41
    $region40: #{tpu_custom_call.1} parent=1 // pred_region
      %76 = dma.done [#allocation6], 18432
    $region41: #{tpu_custom_call.1} parent=1 // pred_fallthru
      _
    // Predicated region
    $region42: #{tpu_custom_call.1} parent=1 // pred_check
      _
    $region43: #{tpu_custom_call.1} parent=1 // pred_check_branch
      %78 = sbr.rel (0) target = $region45
    $region44: #{tpu_custom_call.1} parent=1 // pred_region
      %79 = dma.done [#allocation9], 3072
    $region45: #{tpu_custom_call.1} parent=1 // pred_fallthru
      _
    %v81 = vld [vmem:[#allocation2] sm:$0xf]
    %v82 = vld [vmem:[#allocation5] sm:$0xff]
    %v83 = vld [vmem:[#allocation5 + $0x8] sm:$0xff]
    %v84 = vld [vmem:[#allocation5 + $0x10] sm:$0xff]
    %v85 = vld [vmem:[#allocation5 + $0x18] sm:$0xff]
    %v86 = vld [vmem:[#allocation5 + $0x20] sm:$0xff]
    %v87 = vld [vmem:[#allocation5 + $0x28] sm:$0xff]
    %v88 = vld [vmem:[#allocation5 + $0x30] sm:$0xff]
    %v89 = vld [vmem:[#allocation5 + $0x38] sm:$0xff]
    %v90 = vld [vmem:[#allocation5 + $0x40] sm:$0xff]
    %v91 = vld [vmem:[#allocation5 + $0x48] sm:$0xff]
    %v92 = vld [vmem:[#allocation5 + $0x50] sm:$0xff]
    %v93 = vld [vmem:[#allocation5 + $0x58] sm:$0xff]
    %v94 = vld [vmem:[#allocation5 + $0x60] sm:$0xff]
    %v95 = vld [vmem:[#allocation5 + $0x68] sm:$0xff]
    %v96 = vld [vmem:[#allocation5 + $0x70] sm:$0xff]
    %v97 = vld [vmem:[#allocation5 + $0x78] sm:$0xff]
    %v98 = vld [vmem:[#allocation5 + $0x80] sm:$0xff]
    %v99 = vld [vmem:[#allocation5 + $0x88] sm:$0xff]
    %v100 = vld [vmem:[#allocation5 + $0x90] sm:$0xff]
    %v101 = vld [vmem:[#allocation5 + $0x98] sm:$0xff]
    %v102 = vld [vmem:[#allocation5 + $0xa0] sm:$0xff]
    %v103 = vld [vmem:[#allocation5 + $0xa8] sm:$0xff]
    %v104 = vld [vmem:[#allocation5 + $0xb0] sm:$0xff]
    %v105 = vld [vmem:[#allocation5 + $0xb8] sm:$0xff]
    %v106 = vld [vmem:[%s2] sm:$0x3f]
    %v108 = vlaneseq
    %v109 = vshrl.u32 %v108, 7
    %v110 = vsub.s32 0, %v109
    %v111 = vrot.slane %v106, %v110
    %v112 = vlaneseq
    %v113 = vshrl.u32 %v112, 7
    %v114 = vsub.s32 1, %v113
    %v115 = vrot.slane %v106, %v114
    %v116 = vlaneseq
    %v117 = vshrl.u32 %v116, 7
    %v118 = vsub.s32 2, %v117
    %v119 = vrot.slane %v106, %v118
    %v120 = vlaneseq
    %v121 = vshrl.u32 %v120, 7
    %v122 = vsub.s32 3, %v121
    %v123 = vrot.slane %v106, %v122
    %v124 = vlaneseq
    %v125 = vshrl.u32 %v124, 7
    %v126 = vsub.s32 4, %v125
    %v127 = vrot.slane %v106, %v126
    %v128 = vlaneseq
    %v129 = vshrl.u32 %v128, 7
    %v130 = vsub.s32 5, %v129
    %v131 = vrot.slane %v106, %v130
    %v162 = vunpack.c.l.b16 %v82
    %v163 = vunpack.c.h.b16 %v82
    %v164 = vunpack.c.l.b16 %v83
    %v165 = vunpack.c.h.b16 %v83
    %v166 = vunpack.c.l.b16 %v84
    %v167 = vunpack.c.h.b16 %v84
    %v168 = vunpack.c.l.b16 %v85
    %v169 = vunpack.c.h.b16 %v85
    %v170 = vunpack.c.l.b16 %v86
    %v171 = vunpack.c.h.b16 %v86
    %v172 = vunpack.c.l.b16 %v87
    %v173 = vunpack.c.h.b16 %v87
    %v174 = vunpack.c.l.b16 %v88
    %v175 = vunpack.c.h.b16 %v88
    %v176 = vunpack.c.l.b16 %v89
    %v177 = vunpack.c.h.b16 %v89
    %v178 = vunpack.c.l.b16 %v90
    %v179 = vunpack.c.h.b16 %v90
    %v180 = vunpack.c.l.b16 %v91
    %v181 = vunpack.c.h.b16 %v91
    %v182 = vunpack.c.l.b16 %v92
    %v183 = vunpack.c.h.b16 %v92
    %v184 = vunpack.c.l.b16 %v93
    %v185 = vunpack.c.h.b16 %v93
    %v186 = vunpack.c.l.b16 %v94
    %v187 = vunpack.c.h.b16 %v94
    %v188 = vunpack.c.l.b16 %v95
    %v189 = vunpack.c.h.b16 %v95
    %v190 = vunpack.c.l.b16 %v96
    %v191 = vunpack.c.h.b16 %v96
    %v192 = vunpack.c.l.b16 %v97
    %v193 = vunpack.c.h.b16 %v97
    %v194 = vunpack.c.l.b16 %v98
    %v195 = vunpack.c.h.b16 %v98
    %v196 = vunpack.c.l.b16 %v99
    %v197 = vunpack.c.h.b16 %v99
    %v198 = vunpack.c.l.b16 %v100
    %v199 = vunpack.c.h.b16 %v100
    %v200 = vunpack.c.l.b16 %v101
    %v201 = vunpack.c.h.b16 %v101
    %v202 = vunpack.c.l.b16 %v102
    %v203 = vunpack.c.h.b16 %v102
    %v204 = vunpack.c.l.b16 %v103
    %v205 = vunpack.c.h.b16 %v103
    %v206 = vunpack.c.l.b16 %v104
    %v207 = vunpack.c.h.b16 %v104
    %v208 = vunpack.c.l.b16 %v105
    %v209 = vunpack.c.h.b16 %v105
    %v210 = vpack.c.b16 %v168, %v162
    %v211 = vpack.c.b16 %v169, %v163
    %v212 = vpack.c.b16 %v170, %v164
    %v213 = vpack.c.b16 %v171, %v165
    %v214 = vpack.c.b16 %v172, %v166
    %v215 = vpack.c.b16 %v173, %v167
    %v216 = vpack.c.b16 %v180, %v174
    %v217 = vpack.c.b16 %v181, %v175
    %v218 = vpack.c.b16 %v182, %v176
    %v219 = vpack.c.b16 %v183, %v177
    %v220 = vpack.c.b16 %v184, %v178
    %v221 = vpack.c.b16 %v185, %v179
    %v222 = vpack.c.b16 %v192, %v186
    %v223 = vpack.c.b16 %v193, %v187
    %v224 = vpack.c.b16 %v194, %v188
    %v225 = vpack.c.b16 %v195, %v189
    %v226 = vpack.c.b16 %v196, %v190
    %v227 = vpack.c.b16 %v197, %v191
    %v228 = vpack.c.b16 %v204, %v198
    %v229 = vpack.c.b16 %v205, %v199
    %v230 = vpack.c.b16 %v206, %v200
    %v231 = vpack.c.b16 %v207, %v201
    %v232 = vpack.c.b16 %v208, %v202
    %v233 = vpack.c.b16 %v209, %v203
    %vm258 = vcmask 523264
    %v260 = vsel %vm258, %v81, 0
    %262 = vmatprep.subr.bf16.mxu0 %v211
    %263 = vmatpush1.bf16.msra.mxu0 %v210
    %264 = vmatprep.subr.bf16.mxu0 %v217
    %265 = vmatpush1.bf16.msra.mxu0 %v216
    %266 = vmatprep.subr.bf16.mxu0 %v223
    %267 = vmatpush1.bf16.msra.mxu0 %v222
    %268 = vmatprep.subr.bf16.mxu0 %v229
    %269 = vmatpush1.bf16.msra.mxu0 %v228
    %270 = vmatprep.subr.bf16.mxu0 0
    %271 = vmatpush1.bf16.msra.mxu0 0
    %272 = vmatprep.subr.bf16.mxu0 0
    %273 = vmatpush1.bf16.msra.mxu0 0
    %274 = vmatprep.subr.bf16.mxu0 0
    %275 = vmatpush1.bf16.msra.mxu0 0
    %276 = vmatprep.subr.bf16.mxu0 0
    %277 = vmatpush1.bf16.msra.mxu0 0
    %278 = vmatprep.subr.bf16.mxu0 0
    %279 = vmatpush1.bf16.msra.mxu0 0
    %280 = vmatprep.subr.bf16.mxu0 0
    %281 = vmatpush1.bf16.msra.mxu0 0
    %282 = vmatprep.subr.bf16.mxu0 0
    %283 = vmatpush1.bf16.msra.mxu0 0
    %284 = vmatprep.subr.bf16.mxu0 0
    %285 = vmatpush1.bf16.msra.mxu0 0
    %286 = vmatprep.subr.bf16.mxu0 0
    %287 = vmatpush1.bf16.msra.mxu0 0
    %288 = vmatprep.subr.bf16.mxu0 0
    %289 = vmatpush1.bf16.msra.mxu0 0
    %290 = vmatprep.subr.bf16.mxu0 0
    %291 = vmatpush1.bf16.msra.mxu0 0
    %292 = vmatprep.subr.bf16.mxu0 0
    %293 = vmatpush1.bf16.msra.mxu0 0
    %294 = vmatprep.mubr.bf16.mxu0 0
    %295 = vmatmul.mubr.bf16.gmra.mrb[0].mxu0 %v260
    %v296 = vpop.f32.mrb[0].mxu0
    %v297 = vadd.f32 %v111, %v296
    %v298 = vpop.f32.mrb[0].mxu0
    %v299 = vadd.f32 %v115, %v298
    %v300 = vpop.f32.mrb[0].mxu0
    %v301 = vpop.f32.mrb[0].mxu0
    %302 = vdwg.mxu0
    %303 = vmatprep.subr.bf16.mxu0 %v213
    %304 = vmatpush1.bf16.msra.mxu0 %v212
    %305 = vmatprep.subr.bf16.mxu0 %v219
    %306 = vmatpush1.bf16.msra.mxu0 %v218
    %307 = vmatprep.subr.bf16.mxu0 %v225
    %308 = vmatpush1.bf16.msra.mxu0 %v224
    %309 = vmatprep.subr.bf16.mxu0 %v231
    %310 = vmatpush1.bf16.msra.mxu0 %v230
    %311 = vmatprep.subr.bf16.mxu0 0
    %312 = vmatpush1.bf16.msra.mxu0 0
    %313 = vmatprep.subr.bf16.mxu0 0
    %314 = vmatpush1.bf16.msra.mxu0 0
    %315 = vmatprep.subr.bf16.mxu0 0
    %316 = vmatpush1.bf16.msra.mxu0 0
    %317 = vmatprep.subr.bf16.mxu0 0
    %318 = vmatpush1.bf16.msra.mxu0 0
    %319 = vmatprep.subr.bf16.mxu0 0
    %320 = vmatpush1.bf16.msra.mxu0 0
    %321 = vmatprep.subr.bf16.mxu0 0
    %322 = vmatpush1.bf16.msra.mxu0 0
    %323 = vmatprep.subr.bf16.mxu0 0
    %324 = vmatpush1.bf16.msra.mxu0 0
    %325 = vmatprep.subr.bf16.mxu0 0
    %326 = vmatpush1.bf16.msra.mxu0 0
    %327 = vmatprep.subr.bf16.mxu0 0
    %328 = vmatpush1.bf16.msra.mxu0 0
    %329 = vmatprep.subr.bf16.mxu0 0
    %330 = vmatpush1.bf16.msra.mxu0 0
    %331 = vmatprep.subr.bf16.mxu0 0
    %332 = vmatpush1.bf16.msra.mxu0 0
    %333 = vmatprep.subr.bf16.mxu0 0
    %334 = vmatpush1.bf16.msra.mxu0 0
    %335 = vmatprep.mubr.bf16.mxu0 0
    %336 = vmatmul.mubr.bf16.gmra.mrb[0].mxu0 %v260
    %v337 = vpop.f32.mrb[0].mxu0
    %v338 = vadd.f32 %v119, %v337
    %v339 = vpop.f32.mrb[0].mxu0
    %v340 = vadd.f32 %v123, %v339
    %v341 = vpop.f32.mrb[0].mxu0
    %v342 = vpop.f32.mrb[0].mxu0
    %343 = vdwg.mxu0
    %344 = vmatprep.subr.bf16.mxu0 %v215
    %345 = vmatpush1.bf16.msra.mxu0 %v214
    %346 = vmatprep.subr.bf16.mxu0 %v221
    %347 = vmatpush1.bf16.msra.mxu0 %v220
    %348 = vmatprep.subr.bf16.mxu0 %v227
    %349 = vmatpush1.bf16.msra.mxu0 %v226
    %350 = vmatprep.subr.bf16.mxu0 %v233
    %351 = vmatpush1.bf16.msra.mxu0 %v232
    %352 = vmatprep.subr.bf16.mxu0 0
    %353 = vmatpush1.bf16.msra.mxu0 0
    %354 = vmatprep.subr.bf16.mxu0 0
    %355 = vmatpush1.bf16.msra.mxu0 0
    %356 = vmatprep.subr.bf16.mxu0 0
    %357 = vmatpush1.bf16.msra.mxu0 0
    %358 = vmatprep.subr.bf16.mxu0 0
    %359 = vmatpush1.bf16.msra.mxu0 0
    %360 = vmatprep.subr.bf16.mxu0 0
    %361 = vmatpush1.bf16.msra.mxu0 0
    %362 = vmatprep.subr.bf16.mxu0 0
    %363 = vmatpush1.bf16.msra.mxu0 0
    %364 = vmatprep.subr.bf16.mxu0 0
    %365 = vmatpush1.bf16.msra.mxu0 0
    %366 = vmatprep.subr.bf16.mxu0 0
    %367 = vmatpush1.bf16.msra.mxu0 0
    %368 = vmatprep.subr.bf16.mxu0 0
    %369 = vmatpush1.bf16.msra.mxu0 0
    %370 = vmatprep.subr.bf16.mxu0 0
    %371 = vmatpush1.bf16.msra.mxu0 0
    %372 = vmatprep.subr.bf16.mxu0 0
    %373 = vmatpush1.bf16.msra.mxu0 0
    %374 = vmatprep.subr.bf16.mxu0 0
    %375 = vmatpush1.bf16.msra.mxu0 0
    %376 = vmatprep.mubr.bf16.mxu0 0
    %377 = vmatmul.mubr.bf16.gmra.mrb[0].mxu0 %v260
    %v378 = vpop.f32.mrb[0].mxu0
    %v379 = vadd.f32 %v127, %v378
    %v380 = vpop.f32.mrb[0].mxu0
    %v381 = vadd.f32 %v131, %v380
    %v382 = vpop.f32.mrb[0].mxu0
    %v383 = vpop.f32.mrb[0].mxu0
    %384 = vdwg.mxu0
    %v385 = vmax.f32 %v297, 0.0
    %v386 = vmax.f32 %v299, 0.0
    %v387 = vmax.f32 %v338, 0.0
    %v388 = vmax.f32 %v340, 0.0
    %v389 = vmax.f32 %v379, 0.0
    %v390 = vmax.f32 %v381, 0.0
    %v391 = vmax.f32 %v385, %v388
    %v392 = vmax.f32 %v386, %v389
    %v393 = vmax.f32 %v387, %v390
    %v394 = vpack.c.bf16 %v391, %v391
    %v395 = vpack.c.bf16 %v392, %v392
    %v396 = vpack.c.bf16 %v393, %v393
    %v397 = vld [vmem:[#allocation7] sm:$0xff]
    %v398 = vld [vmem:[#allocation7 + $0x8] sm:$0xff]
    %v399 = vld [vmem:[#allocation7 + $0x10] sm:$0xff]
    %v400 = vld [vmem:[#allocation7 + $0x18] sm:$0xff]
    %v401 = vld [vmem:[#allocation7 + $0x20] sm:$0xff]
    %v402 = vld [vmem:[#allocation7 + $0x28] sm:$0xff]
    %v403 = vld [vmem:[#allocation7 + $0x30] sm:$0xff]
    %v404 = vld [vmem:[#allocation7 + $0x38] sm:$0xff]
    %v405 = vld [vmem:[#allocation7 + $0x40] sm:$0xff]
    %v406 = vld [vmem:[#allocation7 + $0x48] sm:$0xff]
    %v407 = vld [vmem:[#allocation7 + $0x50] sm:$0xff]
    %v408 = vld [vmem:[#allocation7 + $0x58] sm:$0xff]
    %v409 = vld [vmem:[#allocation7 + $0x60] sm:$0xff]
    %v410 = vld [vmem:[#allocation7 + $0x68] sm:$0xff]
    %v411 = vld [vmem:[#allocation7 + $0x70] sm:$0xff]
    %v412 = vld [vmem:[#allocation7 + $0x78] sm:$0xff]
    %v413 = vld [vmem:[#allocation7 + $0x80] sm:$0xff]
    %v414 = vld [vmem:[#allocation7 + $0x88] sm:$0xff]
    %v415 = vld [vmem:[#allocation7 + $0x90] sm:$0xff]
    %v416 = vld [vmem:[#allocation7 + $0x98] sm:$0xff]
    %v417 = vld [vmem:[#allocation7 + $0xa0] sm:$0xff]
    %v418 = vld [vmem:[#allocation7 + $0xa8] sm:$0xff]
    %v419 = vld [vmem:[#allocation7 + $0xb0] sm:$0xff]
    %v420 = vld [vmem:[#allocation7 + $0xb8] sm:$0xff]
    %v421 = vld [vmem:[#allocation7 + $0xc0] sm:$0xff]
    %v422 = vld [vmem:[#allocation7 + $0xc8] sm:$0xff]
    %v423 = vld [vmem:[#allocation7 + $0xd0] sm:$0xff]
    %v424 = vld [vmem:[#allocation7 + $0xd8] sm:$0xff]
    %v425 = vld [vmem:[#allocation7 + $0xe0] sm:$0xff]
    %v426 = vld [vmem:[#allocation7 + $0xe8] sm:$0xff]
    %v427 = vld [vmem:[#allocation7 + $0xf0] sm:$0xff]
    %v428 = vld [vmem:[#allocation7 + $0xf8] sm:$0xff]
    %v429 = vld [vmem:[#allocation7 + $0x100] sm:$0xff]
    %v430 = vld [vmem:[#allocation7 + $0x108] sm:$0xff]
    %v431 = vld [vmem:[#allocation7 + $0x110] sm:$0xff]
    %v432 = vld [vmem:[#allocation7 + $0x118] sm:$0xff]
    %v433 = vld [vmem:[#allocation7 + $0x120] sm:$0xff]
    %v434 = vld [vmem:[#allocation7 + $0x128] sm:$0xff]
    %v435 = vld [vmem:[#allocation7 + $0x130] sm:$0xff]
    %v436 = vld [vmem:[#allocation7 + $0x138] sm:$0xff]
    %v437 = vld [vmem:[#allocation7 + $0x140] sm:$0xff]
    %v438 = vld [vmem:[#allocation7 + $0x148] sm:$0xff]
    %v439 = vld [vmem:[#allocation7 + $0x150] sm:$0xff]
    %v440 = vld [vmem:[#allocation7 + $0x158] sm:$0xff]
    %v441 = vld [vmem:[#allocation7 + $0x160] sm:$0xff]
    %v442 = vld [vmem:[#allocation7 + $0x168] sm:$0xff]
    %v443 = vld [vmem:[#allocation7 + $0x170] sm:$0xff]
    %v444 = vld [vmem:[#allocation7 + $0x178] sm:$0xff]
    %v445 = vld [vmem:[#allocation7 + $0x180] sm:$0xff]
    %v446 = vld [vmem:[#allocation7 + $0x188] sm:$0xff]
    %v447 = vld [vmem:[#allocation7 + $0x190] sm:$0xff]
    %v448 = vld [vmem:[#allocation7 + $0x198] sm:$0xff]
    %v449 = vld [vmem:[#allocation7 + $0x1a0] sm:$0xff]
    %v450 = vld [vmem:[#allocation7 + $0x1a8] sm:$0xff]
    %v451 = vld [vmem:[#allocation7 + $0x1b0] sm:$0xff]
    %v452 = vld [vmem:[#allocation7 + $0x1b8] sm:$0xff]
    %v453 = vld [vmem:[#allocation7 + $0x1c0] sm:$0xff]
    %v454 = vld [vmem:[#allocation7 + $0x1c8] sm:$0xff]
    %v455 = vld [vmem:[#allocation7 + $0x1d0] sm:$0xff]
    %v456 = vld [vmem:[#allocation7 + $0x1d8] sm:$0xff]
    %v457 = vld [vmem:[#allocation7 + $0x1e0] sm:$0xff]
    %v458 = vld [vmem:[#allocation7 + $0x1e8] sm:$0xff]
    %v459 = vld [vmem:[#allocation7 + $0x1f0] sm:$0xff]
    %v460 = vld [vmem:[#allocation7 + $0x1f8] sm:$0xff]
    %v461 = vld [vmem:[#allocation7 + $0x200] sm:$0xff]
    %v462 = vld [vmem:[#allocation7 + $0x208] sm:$0xff]
    %v463 = vld [vmem:[#allocation7 + $0x210] sm:$0xff]
    %v464 = vld [vmem:[#allocation7 + $0x218] sm:$0xff]
    %v465 = vld [vmem:[#allocation7 + $0x220] sm:$0xff]
    %v466 = vld [vmem:[#allocation7 + $0x228] sm:$0xff]
    %v467 = vld [vmem:[#allocation7 + $0x230] sm:$0xff]
    %v468 = vld [vmem:[#allocation7 + $0x238] sm:$0xff]
    %v469 = vld [vmem:[#allocation7 + $0x240] sm:$0xff]
    %v470 = vld [vmem:[#allocation7 + $0x248] sm:$0xff]
    %v471 = vld [vmem:[#allocation7 + $0x250] sm:$0xff]
    %v472 = vld [vmem:[#allocation7 + $0x258] sm:$0xff]
    %v473 = vld [vmem:[#allocation7 + $0x260] sm:$0xff]
    %v474 = vld [vmem:[#allocation7 + $0x268] sm:$0xff]
    %v475 = vld [vmem:[#allocation7 + $0x270] sm:$0xff]
    %v476 = vld [vmem:[#allocation7 + $0x278] sm:$0xff]
    %v477 = vld [vmem:[#allocation7 + $0x280] sm:$0xff]
    %v478 = vld [vmem:[#allocation7 + $0x288] sm:$0xff]
    %v479 = vld [vmem:[#allocation7 + $0x290] sm:$0xff]
    %v480 = vld [vmem:[#allocation7 + $0x298] sm:$0xff]
    %v481 = vld [vmem:[#allocation7 + $0x2a0] sm:$0xff]
    %v482 = vld [vmem:[#allocation7 + $0x2a8] sm:$0xff]
    %v483 = vld [vmem:[#allocation7 + $0x2b0] sm:$0xff]
    %v484 = vld [vmem:[#allocation7 + $0x2b8] sm:$0xff]
    %v485 = vld [vmem:[#allocation7 + $0x2c0] sm:$0xff]
    %v486 = vld [vmem:[#allocation7 + $0x2c8] sm:$0xff]
    %v487 = vld [vmem:[#allocation7 + $0x2d0] sm:$0xff]
    %v488 = vld [vmem:[#allocation7 + $0x2d8] sm:$0xff]
    %v489 = vld [vmem:[#allocation7 + $0x2e0] sm:$0xff]
    %v490 = vld [vmem:[#allocation7 + $0x2e8] sm:$0xff]
    %v491 = vld [vmem:[#allocation7 + $0x2f0] sm:$0xff]
    %v492 = vld [vmem:[#allocation7 + $0x2f8] sm:$0xff]
    %v493 = vld [vmem:[#allocation7 + $0x300] sm:$0xff]
    %v494 = vld [vmem:[#allocation7 + $0x308] sm:$0xff]
    %v495 = vld [vmem:[#allocation7 + $0x310] sm:$0xff]
    %v496 = vld [vmem:[#allocation7 + $0x318] sm:$0xff]
    %v497 = vld [vmem:[#allocation7 + $0x320] sm:$0xff]
    %v498 = vld [vmem:[#allocation7 + $0x328] sm:$0xff]
    %v499 = vld [vmem:[#allocation7 + $0x330] sm:$0xff]
    %v500 = vld [vmem:[#allocation7 + $0x338] sm:$0xff]
    %v501 = vld [vmem:[#allocation7 + $0x340] sm:$0xff]
    %v502 = vld [vmem:[#allocation7 + $0x348] sm:$0xff]
    %v503 = vld [vmem:[#allocation7 + $0x350] sm:$0xff]
    %v504 = vld [vmem:[#allocation7 + $0x358] sm:$0xff]
    %v505 = vld [vmem:[#allocation7 + $0x360] sm:$0xff]
    %v506 = vld [vmem:[#allocation7 + $0x368] sm:$0xff]
    %v507 = vld [vmem:[#allocation7 + $0x370] sm:$0xff]
    %v508 = vld [vmem:[#allocation7 + $0x378] sm:$0xff]
    %v509 = vld [vmem:[#allocation7 + $0x380] sm:$0xff]
    %v510 = vld [vmem:[#allocation7 + $0x388] sm:$0xff]
    %v511 = vld [vmem:[#allocation7 + $0x390] sm:$0xff]
    %v512 = vld [vmem:[#allocation7 + $0x398] sm:$0xff]
    %v513 = vld [vmem:[#allocation7 + $0x3a0] sm:$0xff]
    %v514 = vld [vmem:[#allocation7 + $0x3a8] sm:$0xff]
    %v515 = vld [vmem:[#allocation7 + $0x3b0] sm:$0xff]
    %v516 = vld [vmem:[#allocation7 + $0x3b8] sm:$0xff]
    %v517 = vld [vmem:[#allocation7 + $0x3c0] sm:$0xff]
    %v518 = vld [vmem:[#allocation7 + $0x3c8] sm:$0xff]
    %v519 = vld [vmem:[#allocation7 + $0x3d0] sm:$0xff]
    %v520 = vld [vmem:[#allocation7 + $0x3d8] sm:$0xff]
    %v521 = vld [vmem:[#allocation7 + $0x3e0] sm:$0xff]
    %v522 = vld [vmem:[#allocation7 + $0x3e8] sm:$0xff]
    %v523 = vld [vmem:[#allocation7 + $0x3f0] sm:$0xff]
    %v524 = vld [vmem:[#allocation7 + $0x3f8] sm:$0xff]
    %v525 = vld [vmem:[#allocation7 + $0x400] sm:$0xff]
    %v526 = vld [vmem:[#allocation7 + $0x408] sm:$0xff]
    %v527 = vld [vmem:[#allocation7 + $0x410] sm:$0xff]
    %v528 = vld [vmem:[#allocation7 + $0x418] sm:$0xff]
    %v529 = vld [vmem:[#allocation7 + $0x420] sm:$0xff]
    %v530 = vld [vmem:[#allocation7 + $0x428] sm:$0xff]
    %v531 = vld [vmem:[#allocation7 + $0x430] sm:$0xff]
    %v532 = vld [vmem:[#allocation7 + $0x438] sm:$0xff]
    %v533 = vld [vmem:[#allocation7 + $0x440] sm:$0xff]
    %v534 = vld [vmem:[#allocation7 + $0x448] sm:$0xff]
    %v535 = vld [vmem:[#allocation7 + $0x450] sm:$0xff]
    %v536 = vld [vmem:[#allocation7 + $0x458] sm:$0xff]
    %v537 = vld [vmem:[#allocation7 + $0x460] sm:$0xff]
    %v538 = vld [vmem:[#allocation7 + $0x468] sm:$0xff]
    %v539 = vld [vmem:[#allocation7 + $0x470] sm:$0xff]
    %v540 = vld [vmem:[#allocation7 + $0x478] sm:$0xff]
    %v541 = vld [vmem:[%s4] sm:$0x3f]
    %v543 = vlaneseq
    %v544 = vshrl.u32 %v543, 7
    %v545 = vsub.s32 0, %v544
    %v546 = vrot.slane %v541, %v545
    %v547 = vlaneseq
    %v548 = vshrl.u32 %v547, 7
    %v549 = vsub.s32 1, %v548
    %v550 = vrot.slane %v541, %v549
    %v551 = vlaneseq
    %v552 = vshrl.u32 %v551, 7
    %v553 = vsub.s32 2, %v552
    %v554 = vrot.slane %v541, %v553
    %v555 = vlaneseq
    %v556 = vshrl.u32 %v555, 7
    %v557 = vsub.s32 3, %v556
    %v558 = vrot.slane %v541, %v557
    %v559 = vlaneseq
    %v560 = vshrl.u32 %v559, 7
    %v561 = vsub.s32 4, %v560
    %v562 = vrot.slane %v541, %v561
    %v563 = vlaneseq
    %v564 = vshrl.u32 %v563, 7
    %v565 = vsub.s32 5, %v564
    %v566 = vrot.slane %v541, %v565
    %v717 = vunpack.c.l.b16 %v397
    %v718 = vunpack.c.h.b16 %v397
    %v719 = vunpack.c.l.b16 %v398
    %v720 = vunpack.c.h.b16 %v398
    %v721 = vunpack.c.l.b16 %v399
    %v722 = vunpack.c.h.b16 %v399
    %v723 = vunpack.c.l.b16 %v400
    %v724 = vunpack.c.h.b16 %v400
    %v725 = vunpack.c.l.b16 %v401
    %v726 = vunpack.c.h.b16 %v401
    %v727 = vunpack.c.l.b16 %v402
    %v728 = vunpack.c.h.b16 %v402
    %v729 = vunpack.c.l.b16 %v403
    %v730 = vunpack.c.h.b16 %v403
    %v731 = vunpack.c.l.b16 %v404
    %v732 = vunpack.c.h.b16 %v404
    %v733 = vunpack.c.l.b16 %v405
    %v734 = vunpack.c.h.b16 %v405
    %v735 = vunpack.c.l.b16 %v406
    %v736 = vunpack.c.h.b16 %v406
    %v737 = vunpack.c.l.b16 %v407
    %v738 = vunpack.c.h.b16 %v407
    %v739 = vunpack.c.l.b16 %v408
    %v740 = vunpack.c.h.b16 %v408
    %v741 = vunpack.c.l.b16 %v409
    %v742 = vunpack.c.h.b16 %v409
    %v743 = vunpack.c.l.b16 %v410
    %v744 = vunpack.c.h.b16 %v410
    %v745 = vunpack.c.l.b16 %v411
    %v746 = vunpack.c.h.b16 %v411
    %v747 = vunpack.c.l.b16 %v412
    %v748 = vunpack.c.h.b16 %v412
    %v749 = vunpack.c.l.b16 %v413
    %v750 = vunpack.c.h.b16 %v413
    %v751 = vunpack.c.l.b16 %v414
    %v752 = vunpack.c.h.b16 %v414
    %v753 = vunpack.c.l.b16 %v415
    %v754 = vunpack.c.h.b16 %v415
    %v755 = vunpack.c.l.b16 %v416
    %v756 = vunpack.c.h.b16 %v416
    %v757 = vunpack.c.l.b16 %v417
    %v758 = vunpack.c.h.b16 %v417
    %v759 = vunpack.c.l.b16 %v418
    %v760 = vunpack.c.h.b16 %v418
    %v761 = vunpack.c.l.b16 %v419
    %v762 = vunpack.c.h.b16 %v419
    %v763 = vunpack.c.l.b16 %v420
    %v764 = vunpack.c.h.b16 %v420
    %v765 = vunpack.c.l.b16 %v421
    %v766 = vunpack.c.h.b16 %v421
    %v767 = vunpack.c.l.b16 %v422
    %v768 = vunpack.c.h.b16 %v422
    %v769 = vunpack.c.l.b16 %v423
    %v770 = vunpack.c.h.b16 %v423
    %v771 = vunpack.c.l.b16 %v424
    %v772 = vunpack.c.h.b16 %v424
    %v773 = vunpack.c.l.b16 %v425
    %v774 = vunpack.c.h.b16 %v425
    %v775 = vunpack.c.l.b16 %v426
    %v776 = vunpack.c.h.b16 %v426
    %v777 = vunpack.c.l.b16 %v427
    %v778 = vunpack.c.h.b16 %v427
    %v779 = vunpack.c.l.b16 %v428
    %v780 = vunpack.c.h.b16 %v428
    %v781 = vunpack.c.l.b16 %v429
    %v782 = vunpack.c.h.b16 %v429
    %v783 = vunpack.c.l.b16 %v430
    %v784 = vunpack.c.h.b16 %v430
    %v785 = vunpack.c.l.b16 %v431
    %v786 = vunpack.c.h.b16 %v431
    %v787 = vunpack.c.l.b16 %v432
    %v788 = vunpack.c.h.b16 %v432
    %v789 = vunpack.c.l.b16 %v433
    %v790 = vunpack.c.h.b16 %v433
    %v791 = vunpack.c.l.b16 %v434
    %v792 = vunpack.c.h.b16 %v434
    %v793 = vunpack.c.l.b16 %v435
    %v794 = vunpack.c.h.b16 %v435
    %v795 = vunpack.c.l.b16 %v436
    %v796 = vunpack.c.h.b16 %v436
    %v797 = vunpack.c.l.b16 %v437
    %v798 = vunpack.c.h.b16 %v437
    %v799 = vunpack.c.l.b16 %v438
    %v800 = vunpack.c.h.b16 %v438
    %v801 = vunpack.c.l.b16 %v439
    %v802 = vunpack.c.h.b16 %v439
    %v803 = vunpack.c.l.b16 %v440
    %v804 = vunpack.c.h.b16 %v440
    %v805 = vunpack.c.l.b16 %v441
    %v806 = vunpack.c.h.b16 %v441
    %v807 = vunpack.c.l.b16 %v442
    %v808 = vunpack.c.h.b16 %v442
    %v809 = vunpack.c.l.b16 %v443
    %v810 = vunpack.c.h.b16 %v443
    %v811 = vunpack.c.l.b16 %v444
    %v812 = vunpack.c.h.b16 %v444
    %v813 = vunpack.c.l.b16 %v445
    %v814 = vunpack.c.h.b16 %v445
    %v815 = vunpack.c.l.b16 %v446
    %v816 = vunpack.c.h.b16 %v446
    %v817 = vunpack.c.l.b16 %v447
    %v818 = vunpack.c.h.b16 %v447
    %v819 = vunpack.c.l.b16 %v448
    %v820 = vunpack.c.h.b16 %v448
    %v821 = vunpack.c.l.b16 %v449
    %v822 = vunpack.c.h.b16 %v449
    %v823 = vunpack.c.l.b16 %v450
    %v824 = vunpack.c.h.b16 %v450
    %v825 = vunpack.c.l.b16 %v451
    %v826 = vunpack.c.h.b16 %v451
    %v827 = vunpack.c.l.b16 %v452
    %v828 = vunpack.c.h.b16 %v452
    %v829 = vunpack.c.l.b16 %v453
    %v830 = vunpack.c.h.b16 %v453
    %v831 = vunpack.c.l.b16 %v454
    %v832 = vunpack.c.h.b16 %v454
    %v833 = vunpack.c.l.b16 %v455
    %v834 = vunpack.c.h.b16 %v455
    %v835 = vunpack.c.l.b16 %v456
    %v836 = vunpack.c.h.b16 %v456
    %v837 = vunpack.c.l.b16 %v457
    %v838 = vunpack.c.h.b16 %v457
    %v839 = vunpack.c.l.b16 %v458
    %v840 = vunpack.c.h.b16 %v458
    %v841 = vunpack.c.l.b16 %v459
    %v842 = vunpack.c.h.b16 %v459
    %v843 = vunpack.c.l.b16 %v460
    %v844 = vunpack.c.h.b16 %v460
    %v845 = vunpack.c.l.b16 %v461
    %v846 = vunpack.c.h.b16 %v461
    %v847 = vunpack.c.l.b16 %v462
    %v848 = vunpack.c.h.b16 %v462
    %v849 = vunpack.c.l.b16 %v463
    %v850 = vunpack.c.h.b16 %v463
    %v851 = vunpack.c.l.b16 %v464
    %v852 = vunpack.c.h.b16 %v464
    %v853 = vunpack.c.l.b16 %v465
    %v854 = vunpack.c.h.b16 %v465
    %v855 = vunpack.c.l.b16 %v466
    %v856 = vunpack.c.h.b16 %v466
    %v857 = vunpack.c.l.b16 %v467
    %v858 = vunpack.c.h.b16 %v467
    %v859 = vunpack.c.l.b16 %v468
    %v860 = vunpack.c.h.b16 %v468
    %v861 = vunpack.c.l.b16 %v469
    %v862 = vunpack.c.h.b16 %v469
    %v863 = vunpack.c.l.b16 %v470
    %v864 = vunpack.c.h.b16 %v470
    %v865 = vunpack.c.l.b16 %v471
    %v866 = vunpack.c.h.b16 %v471
    %v867 = vunpack.c.l.b16 %v472
    %v868 = vunpack.c.h.b16 %v472
    %v869 = vunpack.c.l.b16 %v473
    %v870 = vunpack.c.h.b16 %v473
    %v871 = vunpack.c.l.b16 %v474
    %v872 = vunpack.c.h.b16 %v474
    %v873 = vunpack.c.l.b16 %v475
    %v874 = vunpack.c.h.b16 %v475
    %v875 = vunpack.c.l.b16 %v476
    %v876 = vunpack.c.h.b16 %v476
    %v877 = vunpack.c.l.b16 %v477
    %v878 = vunpack.c.h.b16 %v477
    %v879 = vunpack.c.l.b16 %v478
    %v880 = vunpack.c.h.b16 %v478
    %v881 = vunpack.c.l.b16 %v479
    %v882 = vunpack.c.h.b16 %v479
    %v883 = vunpack.c.l.b16 %v480
    %v884 = vunpack.c.h.b16 %v480
    %v885 = vunpack.c.l.b16 %v481
    %v886 = vunpack.c.h.b16 %v481
    %v887 = vunpack.c.l.b16 %v482
    %v888 = vunpack.c.h.b16 %v482
    %v889 = vunpack.c.l.b16 %v483
    %v890 = vunpack.c.h.b16 %v483
    %v891 = vunpack.c.l.b16 %v484
    %v892 = vunpack.c.h.b16 %v484
    %v893 = vunpack.c.l.b16 %v485
    %v894 = vunpack.c.h.b16 %v485
    %v895 = vunpack.c.l.b16 %v486
    %v896 = vunpack.c.h.b16 %v486
    %v897 = vunpack.c.l.b16 %v487
    %v898 = vunpack.c.h.b16 %v487
    %v899 = vunpack.c.l.b16 %v488
    %v900 = vunpack.c.h.b16 %v488
    %v901 = vunpack.c.l.b16 %v489
    %v902 = vunpack.c.h.b16 %v489
    %v903 = vunpack.c.l.b16 %v490
    %v904 = vunpack.c.h.b16 %v490
    %v905 = vunpack.c.l.b16 %v491
    %v906 = vunpack.c.h.b16 %v491
    %v907 = vunpack.c.l.b16 %v492
    %v908 = vunpack.c.h.b16 %v492
    %v909 = vunpack.c.l.b16 %v493
    %v910 = vunpack.c.h.b16 %v493
    %v911 = vunpack.c.l.b16 %v494
    %v912 = vunpack.c.h.b16 %v494
    %v913 = vunpack.c.l.b16 %v495
    %v914 = vunpack.c.h.b16 %v495
    %v915 = vunpack.c.l.b16 %v496
    %v916 = vunpack.c.h.b16 %v496
    %v917 = vunpack.c.l.b16 %v497
    %v918 = vunpack.c.h.b16 %v497
    %v919 = vunpack.c.l.b16 %v498
    %v920 = vunpack.c.h.b16 %v498
    %v921 = vunpack.c.l.b16 %v499
    %v922 = vunpack.c.h.b16 %v499
    %v923 = vunpack.c.l.b16 %v500
    %v924 = vunpack.c.h.b16 %v500
    %v925 = vunpack.c.l.b16 %v501
    %v926 = vunpack.c.h.b16 %v501
    %v927 = vunpack.c.l.b16 %v502
    %v928 = vunpack.c.h.b16 %v502
    %v929 = vunpack.c.l.b16 %v503
    %v930 = vunpack.c.h.b16 %v503
    %v931 = vunpack.c.l.b16 %v504
    %v932 = vunpack.c.h.b16 %v504
    %v933 = vunpack.c.l.b16 %v505
    %v934 = vunpack.c.h.b16 %v505
    %v935 = vunpack.c.l.b16 %v506
    %v936 = vunpack.c.h.b16 %v506
    %v937 = vunpack.c.l.b16 %v507
    %v938 = vunpack.c.h.b16 %v507
    %v939 = vunpack.c.l.b16 %v508
    %v940 = vunpack.c.h.b16 %v508
    %v941 = vunpack.c.l.b16 %v509
    %v942 = vunpack.c.h.b16 %v509
    %v943 = vunpack.c.l.b16 %v510
    %v944 = vunpack.c.h.b16 %v510
    %v945 = vunpack.c.l.b16 %v511
    %v946 = vunpack.c.h.b16 %v511
    %v947 = vunpack.c.l.b16 %v512
    %v948 = vunpack.c.h.b16 %v512
    %v949 = vunpack.c.l.b16 %v513
    %v950 = vunpack.c.h.b16 %v513
    %v951 = vunpack.c.l.b16 %v514
    %v952 = vunpack.c.h.b16 %v514
    %v953 = vunpack.c.l.b16 %v515
    %v954 = vunpack.c.h.b16 %v515
    %v955 = vunpack.c.l.b16 %v516
    %v956 = vunpack.c.h.b16 %v516
    %v957 = vunpack.c.l.b16 %v517
    %v958 = vunpack.c.h.b16 %v517
    %v959 = vunpack.c.l.b16 %v518
    %v960 = vunpack.c.h.b16 %v518
    %v961 = vunpack.c.l.b16 %v519
    %v962 = vunpack.c.h.b16 %v519
    %v963 = vunpack.c.l.b16 %v520
    %v964 = vunpack.c.h.b16 %v520
    %v965 = vunpack.c.l.b16 %v521
    %v966 = vunpack.c.h.b16 %v521
    %v967 = vunpack.c.l.b16 %v522
    %v968 = vunpack.c.h.b16 %v522
    %v969 = vunpack.c.l.b16 %v523
    %v970 = vunpack.c.h.b16 %v523
    %v971 = vunpack.c.l.b16 %v524
    %v972 = vunpack.c.h.b16 %v524
    %v973 = vunpack.c.l.b16 %v525
    %v974 = vunpack.c.h.b16 %v525
    %v975 = vunpack.c.l.b16 %v526
    %v976 = vunpack.c.h.b16 %v526
    %v977 = vunpack.c.l.b16 %v527
    %v978 = vunpack.c.h.b16 %v527
    %v979 = vunpack.c.l.b16 %v528
    %v980 = vunpack.c.h.b16 %v528
    %v981 = vunpack.c.l.b16 %v529
    %v982 = vunpack.c.h.b16 %v529
    %v983 = vunpack.c.l.b16 %v530
    %v984 = vunpack.c.h.b16 %v530
    %v985 = vunpack.c.l.b16 %v531
    %v986 = vunpack.c.h.b16 %v531
    %v987 = vunpack.c.l.b16 %v532
    %v988 = vunpack.c.h.b16 %v532
    %v989 = vunpack.c.l.b16 %v533
    %v990 = vunpack.c.h.b16 %v533
    %v991 = vunpack.c.l.b16 %v534
    %v992 = vunpack.c.h.b16 %v534
    %v993 = vunpack.c.l.b16 %v535
    %v994 = vunpack.c.h.b16 %v535
    %v995 = vunpack.c.l.b16 %v536
    %v996 = vunpack.c.h.b16 %v536
    %v997 = vunpack.c.l.b16 %v537
    %v998 = vunpack.c.h.b16 %v537
    %v999 = vunpack.c.l.b16 %v538
    %v1000 = vunpack.c.h.b16 %v538
    %v1001 = vunpack.c.l.b16 %v539
    %v1002 = vunpack.c.h.b16 %v539
    %v1003 = vunpack.c.l.b16 %v540
    %v1004 = vunpack.c.h.b16 %v540
    %v1005 = vpack.c.b16 %v723, %v717
    %v1006 = vpack.c.b16 %v724, %v718
    %v1007 = vpack.c.b16 %v725, %v719
    %v1008 = vpack.c.b16 %v726, %v720
    %v1009 = vpack.c.b16 %v727, %v721
    %v1010 = vpack.c.b16 %v728, %v722
    %v1011 = vpack.c.b16 %v735, %v729
    %v1012 = vpack.c.b16 %v736, %v730
    %v1013 = vpack.c.b16 %v737, %v731
    %v1014 = vpack.c.b16 %v738, %v732
    %v1015 = vpack.c.b16 %v739, %v733
    %v1016 = vpack.c.b16 %v740, %v734
    %v1017 = vpack.c.b16 %v747, %v741
    %v1018 = vpack.c.b16 %v748, %v742
    %v1019 = vpack.c.b16 %v749, %v743
    %v1020 = vpack.c.b16 %v750, %v744
    %v1021 = vpack.c.b16 %v751, %v745
    %v1022 = vpack.c.b16 %v752, %v746
    %v1023 = vpack.c.b16 %v759, %v753
    %v1024 = vpack.c.b16 %v760, %v754
    %v1025 = vpack.c.b16 %v761, %v755
    %v1026 = vpack.c.b16 %v762, %v756
    %v1027 = vpack.c.b16 %v763, %v757
    %v1028 = vpack.c.b16 %v764, %v758
    %v1029 = vpack.c.b16 %v771, %v765
    %v1030 = vpack.c.b16 %v772, %v766
    %v1031 = vpack.c.b16 %v773, %v767
    %v1032 = vpack.c.b16 %v774, %v768
    %v1033 = vpack.c.b16 %v775, %v769
    %v1034 = vpack.c.b16 %v776, %v770
    %v1035 = vpack.c.b16 %v783, %v777
    %v1036 = vpack.c.b16 %v784, %v778
    %v1037 = vpack.c.b16 %v785, %v779
    %v1038 = vpack.c.b16 %v786, %v780
    %v1039 = vpack.c.b16 %v787, %v781
    %v1040 = vpack.c.b16 %v788, %v782
    %v1041 = vpack.c.b16 %v795, %v789
    %v1042 = vpack.c.b16 %v796, %v790
    %v1043 = vpack.c.b16 %v797, %v791
    %v1044 = vpack.c.b16 %v798, %v792
    %v1045 = vpack.c.b16 %v799, %v793
    %v1046 = vpack.c.b16 %v800, %v794
    %v1047 = vpack.c.b16 %v807, %v801
    %v1048 = vpack.c.b16 %v808, %v802
    %v1049 = vpack.c.b16 %v809, %v803
    %v1050 = vpack.c.b16 %v810, %v804
    %v1051 = vpack.c.b16 %v811, %v805
    %v1052 = vpack.c.b16 %v812, %v806
    %v1053 = vpack.c.b16 %v819, %v813
    %v1054 = vpack.c.b16 %v820, %v814
    %v1055 = vpack.c.b16 %v821, %v815
    %v1056 = vpack.c.b16 %v822, %v816
    %v1057 = vpack.c.b16 %v823, %v817
    %v1058 = vpack.c.b16 %v824, %v818
    %v1059 = vpack.c.b16 %v831, %v825
    %v1060 = vpack.c.b16 %v832, %v826
    %v1061 = vpack.c.b16 %v833, %v827
    %v1062 = vpack.c.b16 %v834, %v828
    %v1063 = vpack.c.b16 %v835, %v829
    %v1064 = vpack.c.b16 %v836, %v830
    %v1065 = vpack.c.b16 %v843, %v837
    %v1066 = vpack.c.b16 %v844, %v838
    %v1067 = vpack.c.b16 %v845, %v839
    %v1068 = vpack.c.b16 %v846, %v840
    %v1069 = vpack.c.b16 %v847, %v841
    %v1070 = vpack.c.b16 %v848, %v842
    %v1071 = vpack.c.b16 %v855, %v849
    %v1072 = vpack.c.b16 %v856, %v850
    %v1073 = vpack.c.b16 %v857, %v851
    %v1074 = vpack.c.b16 %v858, %v852
    %v1075 = vpack.c.b16 %v859, %v853
    %v1076 = vpack.c.b16 %v860, %v854
    %v1077 = vpack.c.b16 %v867, %v861
    %v1078 = vpack.c.b16 %v868, %v862
    %v1079 = vpack.c.b16 %v869, %v863
    %v1080 = vpack.c.b16 %v870, %v864
    %v1081 = vpack.c.b16 %v871, %v865
    %v1082 = vpack.c.b16 %v872, %v866
    %v1083 = vpack.c.b16 %v879, %v873
    %v1084 = vpack.c.b16 %v880, %v874
    %v1085 = vpack.c.b16 %v881, %v875
    %v1086 = vpack.c.b16 %v882, %v876
    %v1087 = vpack.c.b16 %v883, %v877
    %v1088 = vpack.c.b16 %v884, %v878
    %v1089 = vpack.c.b16 %v891, %v885
    %v1090 = vpack.c.b16 %v892, %v886
    %v1091 = vpack.c.b16 %v893, %v887
    %v1092 = vpack.c.b16 %v894, %v888
    %v1093 = vpack.c.b16 %v895, %v889
    %v1094 = vpack.c.b16 %v896, %v890
    %v1095 = vpack.c.b16 %v903, %v897
    %v1096 = vpack.c.b16 %v904, %v898
    %v1097 = vpack.c.b16 %v905, %v899
    %v1098 = vpack.c.b16 %v906, %v900
    %v1099 = vpack.c.b16 %v907, %v901
    %v1100 = vpack.c.b16 %v908, %v902
    %v1101 = vpack.c.b16 %v915, %v909
    %v1102 = vpack.c.b16 %v916, %v910
    %v1103 = vpack.c.b16 %v917, %v911
    %v1104 = vpack.c.b16 %v918, %v912
    %v1105 = vpack.c.b16 %v919, %v913
    %v1106 = vpack.c.b16 %v920, %v914
    %v1107 = vpack.c.b16 %v927, %v921
    %v1108 = vpack.c.b16 %v928, %v922
    %v1109 = vpack.c.b16 %v929, %v923
    %v1110 = vpack.c.b16 %v930, %v924
    %v1111 = vpack.c.b16 %v931, %v925
    %v1112 = vpack.c.b16 %v932, %v926
    %v1113 = vpack.c.b16 %v939, %v933
    %v1114 = vpack.c.b16 %v940, %v934
    %v1115 = vpack.c.b16 %v941, %v935
    %v1116 = vpack.c.b16 %v942, %v936
    %v1117 = vpack.c.b16 %v943, %v937
    %v1118 = vpack.c.b16 %v944, %v938
    %v1119 = vpack.c.b16 %v951, %v945
    %v1120 = vpack.c.b16 %v952, %v946
    %v1121 = vpack.c.b16 %v953, %v947
    %v1122 = vpack.c.b16 %v954, %v948
    %v1123 = vpack.c.b16 %v955, %v949
    %v1124 = vpack.c.b16 %v956, %v950
    %v1125 = vpack.c.b16 %v963, %v957
    %v1126 = vpack.c.b16 %v964, %v958
    %v1127 = vpack.c.b16 %v965, %v959
    %v1128 = vpack.c.b16 %v966, %v960
    %v1129 = vpack.c.b16 %v967, %v961
    %v1130 = vpack.c.b16 %v968, %v962
    %v1131 = vpack.c.b16 %v975, %v969
    %v1132 = vpack.c.b16 %v976, %v970
    %v1133 = vpack.c.b16 %v977, %v971
    %v1134 = vpack.c.b16 %v978, %v972
    %v1135 = vpack.c.b16 %v979, %v973
    %v1136 = vpack.c.b16 %v980, %v974
    %v1137 = vpack.c.b16 %v987, %v981
    %v1138 = vpack.c.b16 %v988, %v982
    %v1139 = vpack.c.b16 %v989, %v983
    %v1140 = vpack.c.b16 %v990, %v984
    %v1141 = vpack.c.b16 %v991, %v985
    %v1142 = vpack.c.b16 %v992, %v986
    %v1143 = vpack.c.b16 %v999, %v993
    %v1144 = vpack.c.b16 %v1000, %v994
    %v1145 = vpack.c.b16 %v1001, %v995
    %v1146 = vpack.c.b16 %v1002, %v996
    %v1147 = vpack.c.b16 %v1003, %v997
    %v1148 = vpack.c.b16 %v1004, %v998
    %1293 = vmatprep.subr.bf16.mxu0 %v1006
    %1294 = vmatpush1.bf16.msra.mxu0 %v1005
    %1295 = vmatprep.subr.bf16.mxu0 %v1012
    %1296 = vmatpush1.bf16.msra.mxu0 %v1011
    %1297 = vmatprep.subr.bf16.mxu0 %v1018
    %1298 = vmatpush1.bf16.msra.mxu0 %v1017
    %1299 = vmatprep.subr.bf16.mxu0 %v1024
    %1300 = vmatpush1.bf16.msra.mxu0 %v1023
    %1301 = vmatprep.subr.bf16.mxu0 %v1030
    %1302 = vmatpush1.bf16.msra.mxu0 %v1029
    %1303 = vmatprep.subr.bf16.mxu0 %v1036
    %1304 = vmatpush1.bf16.msra.mxu0 %v1035
    %1305 = vmatprep.subr.bf16.mxu0 %v1042
    %1306 = vmatpush1.bf16.msra.mxu0 %v1041
    %1307 = vmatprep.subr.bf16.mxu0 %v1048
    %1308 = vmatpush1.bf16.msra.mxu0 %v1047
    %1309 = vmatprep.subr.bf16.mxu0 %v1054
    %1310 = vmatpush1.bf16.msra.mxu0 %v1053
    %1311 = vmatprep.subr.bf16.mxu0 %v1060
    %1312 = vmatpush1.bf16.msra.mxu0 %v1059
    %1313 = vmatprep.subr.bf16.mxu0 %v1066
    %1314 = vmatpush1.bf16.msra.mxu0 %v1065
    %1315 = vmatprep.subr.bf16.mxu0 %v1072
    %1316 = vmatpush1.bf16.msra.mxu0 %v1071
    %1317 = vmatprep.subr.bf16.mxu0 %v1078
    %1318 = vmatpush1.bf16.msra.mxu0 %v1077
    %1319 = vmatprep.subr.bf16.mxu0 %v1084
    %1320 = vmatpush1.bf16.msra.mxu0 %v1083
    %1321 = vmatprep.subr.bf16.mxu0 %v1090
    %1322 = vmatpush1.bf16.msra.mxu0 %v1089
    %1323 = vmatprep.subr.bf16.mxu0 %v1096
    %1324 = vmatpush1.bf16.msra.mxu0 %v1095
    %1325 = vmatprep.mubr.bf16.mxu0 %v395
    %1326 = vmatmul.mubr.bf16.gmra.mrb[0].mxu0 %v394
    %v1327 = vpop.f32.mrb[0].mxu0
    %v1328 = vadd.f32 %v546, %v1327
    %v1329 = vpop.f32.mrb[0].mxu0
    %v1330 = vadd.f32 %v550, %v1329
    %v1331 = vpop.f32.mrb[0].mxu0
    %v1332 = vpop.f32.mrb[0].mxu0
    %1333 = vdwg.mxu0
    %1334 = vmatprep.subr.bf16.mxu0 %v1102
    %1335 = vmatpush1.bf16.msra.mxu0 %v1101
    %1336 = vmatprep.subr.bf16.mxu0 %v1108
    %1337 = vmatpush1.bf16.msra.mxu0 %v1107
    %1338 = vmatprep.subr.bf16.mxu0 %v1114
    %1339 = vmatpush1.bf16.msra.mxu0 %v1113
    %1340 = vmatprep.subr.bf16.mxu0 %v1120
    %1341 = vmatpush1.bf16.msra.mxu0 %v1119
    %1342 = vmatprep.subr.bf16.mxu0 %v1126
    %1343 = vmatpush1.bf16.msra.mxu0 %v1125
    %1344 = vmatprep.subr.bf16.mxu0 %v1132
    %1345 = vmatpush1.bf16.msra.mxu0 %v1131
    %1346 = vmatprep.subr.bf16.mxu0 %v1138
    %1347 = vmatpush1.bf16.msra.mxu0 %v1137
    %1348 = vmatprep.subr.bf16.mxu0 %v1144
    %1349 = vmatpush1.bf16.msra.mxu0 %v1143
    %1350 = vmatprep.subr.bf16.mxu0 0
    %1351 = vmatpush1.bf16.msra.mxu0 0
    %1352 = vmatprep.subr.bf16.mxu0 0
    %1353 = vmatpush1.bf16.msra.mxu0 0
    %1354 = vmatprep.subr.bf16.mxu0 0
    %1355 = vmatpush1.bf16.msra.mxu0 0
    %1356 = vmatprep.subr.bf16.mxu0 0
    %1357 = vmatpush1.bf16.msra.mxu0 0
    %1358 = vmatprep.subr.bf16.mxu0 0
    %1359 = vmatpush1.bf16.msra.mxu0 0
    %1360 = vmatprep.subr.bf16.mxu0 0
    %1361 = vmatpush1.bf16.msra.mxu0 0
    %1362 = vmatprep.subr.bf16.mxu0 0
    %1363 = vmatpush1.bf16.msra.mxu0 0
    %1364 = vmatprep.subr.bf16.mxu0 0
    %1365 = vmatpush1.bf16.msra.mxu0 0
    %1366 = vmatprep.mubr.bf16.mxu0 0
    %1367 = vmatmul.mubr.bf16.gmra.mrb[0].mxu0 %v396
    %v1368 = vpop.f32.mrb[0].mxu0
    %v1369 = vadd.f32 %v1328, %v1368
    %v1370 = vpop.f32.mrb[0].mxu0
    %v1371 = vadd.f32 %v1330, %v1370
    %v1372 = vpop.f32.mrb[0].mxu0
    %v1373 = vpop.f32.mrb[0].mxu0
    %1374 = vdwg.mxu0
    %1375 = vmatprep.subr.bf16.mxu0 %v1008
    %1376 = vmatpush1.bf16.msra.mxu0 %v1007
    %1377 = vmatprep.subr.bf16.mxu0 %v1014
    %1378 = vmatpush1.bf16.msra.mxu0 %v1013
    %1379 = vmatprep.subr.bf16.mxu0 %v1020
    %1380 = vmatpush1.bf16.msra.mxu0 %v1019
    %1381 = vmatprep.subr.bf16.mxu0 %v1026
    %1382 = vmatpush1.bf16.msra.mxu0 %v1025
    %1383 = vmatprep.subr.bf16.mxu0 %v1032
    %1384 = vmatpush1.bf16.msra.mxu0 %v1031
    %1385 = vmatprep.subr.bf16.mxu0 %v1038
    %1386 = vmatpush1.bf16.msra.mxu0 %v1037
    %1387 = vmatprep.subr.bf16.mxu0 %v1044
    %1388 = vmatpush1.bf16.msra.mxu0 %v1043
    %1389 = vmatprep.subr.bf16.mxu0 %v1050
    %1390 = vmatpush1.bf16.msra.mxu0 %v1049
    %1391 = vmatprep.subr.bf16.mxu0 %v1056
    %1392 = vmatpush1.bf16.msra.mxu0 %v1055
    %1393 = vmatprep.subr.bf16.mxu0 %v1062
    %1394 = vmatpush1.bf16.msra.mxu0 %v1061
    %1395 = vmatprep.subr.bf16.mxu0 %v1068
    %1396 = vmatpush1.bf16.msra.mxu0 %v1067
    %1397 = vmatprep.subr.bf16.mxu0 %v1074
    %1398 = vmatpush1.bf16.msra.mxu0 %v1073
    %1399 = vmatprep.subr.bf16.mxu0 %v1080
    %1400 = vmatpush1.bf16.msra.mxu0 %v1079
    %1401 = vmatprep.subr.bf16.mxu0 %v1086
    %1402 = vmatpush1.bf16.msra.mxu0 %v1085
    %1403 = vmatprep.subr.bf16.mxu0 %v1092
    %1404 = vmatpush1.bf16.msra.mxu0 %v1091
    %1405 = vmatprep.subr.bf16.mxu0 %v1098
    %1406 = vmatpush1.bf16.msra.mxu0 %v1097
    %1407 = vmatprep.mubr.bf16.mxu0 %v395
    %1408 = vmatmul.mubr.bf16.gmra.mrb[0].mxu0 %v394
    %v1409 = vpop.f32.mrb[0].mxu0
    %v1410 = vadd.f32 %v554, %v1409
    %v1411 = vpop.f32.mrb[0].mxu0
    %v1412 = vadd.f32 %v558, %v1411
    %v1413 = vpop.f32.mrb[0].mxu0
    %v1414 = vpop.f32.mrb[0].mxu0
    %1415 = vdwg.mxu0
    %1416 = vmatprep.subr.bf16.mxu0 %v1104
    %1417 = vmatpush1.bf16.msra.mxu0 %v1103
    %1418 = vmatprep.subr.bf16.mxu0 %v1110
    %1419 = vmatpush1.bf16.msra.mxu0 %v1109
    %1420 = vmatprep.subr.bf16.mxu0 %v1116
    %1421 = vmatpush1.bf16.msra.mxu0 %v1115
    %1422 = vmatprep.subr.bf16.mxu0 %v1122
    %1423 = vmatpush1.bf16.msra.mxu0 %v1121
    %1424 = vmatprep.subr.bf16.mxu0 %v1128
    %1425 = vmatpush1.bf16.msra.mxu0 %v1127
    %1426 = vmatprep.subr.bf16.mxu0 %v1134
    %1427 = vmatpush1.bf16.msra.mxu0 %v1133
    %1428 = vmatprep.subr.bf16.mxu0 %v1140
    %1429 = vmatpush1.bf16.msra.mxu0 %v1139
    %1430 = vmatprep.subr.bf16.mxu0 %v1146
    %1431 = vmatpush1.bf16.msra.mxu0 %v1145
    %1432 = vmatprep.subr.bf16.mxu0 0
    %1433 = vmatpush1.bf16.msra.mxu0 0
    %1434 = vmatprep.subr.bf16.mxu0 0
    %1435 = vmatpush1.bf16.msra.mxu0 0
    %1436 = vmatprep.subr.bf16.mxu0 0
    %1437 = vmatpush1.bf16.msra.mxu0 0
    %1438 = vmatprep.subr.bf16.mxu0 0
    %1439 = vmatpush1.bf16.msra.mxu0 0
    %1440 = vmatprep.subr.bf16.mxu0 0
    %1441 = vmatpush1.bf16.msra.mxu0 0
    %1442 = vmatprep.subr.bf16.mxu0 0
    %1443 = vmatpush1.bf16.msra.mxu0 0
    %1444 = vmatprep.subr.bf16.mxu0 0
    %1445 = vmatpush1.bf16.msra.mxu0 0
    %1446 = vmatprep.subr.bf16.mxu0 0
    %1447 = vmatpush1.bf16.msra.mxu0 0
    %1448 = vmatprep.mubr.bf16.mxu0 0
    %1449 = vmatmul.mubr.bf16.gmra.mrb[0].mxu0 %v396
    %v1450 = vpop.f32.mrb[0].mxu0
    %v1451 = vadd.f32 %v1410, %v1450
    %v1452 = vpop.f32.mrb[0].mxu0
    %v1453 = vadd.f32 %v1412, %v1452
    %v1454 = vpop.f32.mrb[0].mxu0
    %v1455 = vpop.f32.mrb[0].mxu0
    %1456 = vdwg.mxu0
    %1457 = vmatprep.subr.bf16.mxu0 %v1010
    %1458 = vmatpush1.bf16.msra.mxu0 %v1009
    %1459 = vmatprep.subr.bf16.mxu0 %v1016
    %1460 = vmatpush1.bf16.msra.mxu0 %v1015
    %1461 = vmatprep.subr.bf16.mxu0 %v1022
    %1462 = vmatpush1.bf16.msra.mxu0 %v1021
    %1463 = vmatprep.subr.bf16.mxu0 %v1028
    %1464 = vmatpush1.bf16.msra.mxu0 %v1027
    %1465 = vmatprep.subr.bf16.mxu0 %v1034
    %1466 = vmatpush1.bf16.msra.mxu0 %v1033
    %1467 = vmatprep.subr.bf16.mxu0 %v1040
    %1468 = vmatpush1.bf16.msra.mxu0 %v1039
    %1469 = vmatprep.subr.bf16.mxu0 %v1046
    %1470 = vmatpush1.bf16.msra.mxu0 %v1045
    %1471 = vmatprep.subr.bf16.mxu0 %v1052
    %1472 = vmatpush1.bf16.msra.mxu0 %v1051
    %1473 = vmatprep.subr.bf16.mxu0 %v1058
    %1474 = vmatpush1.bf16.msra.mxu0 %v1057
    %1475 = vmatprep.subr.bf16.mxu0 %v1064
    %1476 = vmatpush1.bf16.msra.mxu0 %v1063
    %1477 = vmatprep.subr.bf16.mxu0 %v1070
    %1478 = vmatpush1.bf16.msra.mxu0 %v1069
    %1479 = vmatprep.subr.bf16.mxu0 %v1076
    %1480 = vmatpush1.bf16.msra.mxu0 %v1075
    %1481 = vmatprep.subr.bf16.mxu0 %v1082
    %1482 = vmatpush1.bf16.msra.mxu0 %v1081
    %1483 = vmatprep.subr.bf16.mxu0 %v1088
    %1484 = vmatpush1.bf16.msra.mxu0 %v1087
    %1485 = vmatprep.subr.bf16.mxu0 %v1094
    %1486 = vmatpush1.bf16.msra.mxu0 %v1093
    %1487 = vmatprep.subr.bf16.mxu0 %v1100
    %1488 = vmatpush1.bf16.msra.mxu0 %v1099
    %1489 = vmatprep.mubr.bf16.mxu0 %v395
    %1490 = vmatmul.mubr.bf16.gmra.mrb[0].mxu0 %v394
    %v1491 = vpop.f32.mrb[0].mxu0
    %v1492 = vadd.f32 %v562, %v1491
    %v1493 = vpop.f32.mrb[0].mxu0
    %v1494 = vadd.f32 %v566, %v1493
    %v1495 = vpop.f32.mrb[0].mxu0
    %v1496 = vpop.f32.mrb[0].mxu0
    %1497 = vdwg.mxu0
    %1498 = vmatprep.subr.bf16.mxu0 %v1106
    %1499 = vmatpush1.bf16.msra.mxu0 %v1105
    %1500 = vmatprep.subr.bf16.mxu0 %v1112
    %1501 = vmatpush1.bf16.msra.mxu0 %v1111
    %1502 = vmatprep.subr.bf16.mxu0 %v1118
    %1503 = vmatpush1.bf16.msra.mxu0 %v1117
    %1504 = vmatprep.subr.bf16.mxu0 %v1124
    %1505 = vmatpush1.bf16.msra.mxu0 %v1123
    %1506 = vmatprep.subr.bf16.mxu0 %v1130
    %1507 = vmatpush1.bf16.msra.mxu0 %v1129
    %1508 = vmatprep.subr.bf16.mxu0 %v1136
    %1509 = vmatpush1.bf16.msra.mxu0 %v1135
    %1510 = vmatprep.subr.bf16.mxu0 %v1142
    %1511 = vmatpush1.bf16.msra.mxu0 %v1141
    %1512 = vmatprep.subr.bf16.mxu0 %v1148
    %1513 = vmatpush1.bf16.msra.mxu0 %v1147
    %1514 = vmatprep.subr.bf16.mxu0 0
    %1515 = vmatpush1.bf16.msra.mxu0 0
    %1516 = vmatprep.subr.bf16.mxu0 0
    %1517 = vmatpush1.bf16.msra.mxu0 0
    %1518 = vmatprep.subr.bf16.mxu0 0
    %1519 = vmatpush1.bf16.msra.mxu0 0
    %1520 = vmatprep.subr.bf16.mxu0 0
    %1521 = vmatpush1.bf16.msra.mxu0 0
    %1522 = vmatprep.subr.bf16.mxu0 0
    %1523 = vmatpush1.bf16.msra.mxu0 0
    %1524 = vmatprep.subr.bf16.mxu0 0
    %1525 = vmatpush1.bf16.msra.mxu0 0
    %1526 = vmatprep.subr.bf16.mxu0 0
    %1527 = vmatpush1.bf16.msra.mxu0 0
    %1528 = vmatprep.subr.bf16.mxu0 0
    %1529 = vmatpush1.bf16.msra.mxu0 0
    %1530 = vmatprep.mubr.bf16.mxu0 0
    %1531 = vmatmul.mubr.bf16.gmra.mrb[0].mxu0 %v396
    %v1532 = vpop.f32.mrb[0].mxu0
    %v1533 = vadd.f32 %v1492, %v1532
    %v1534 = vpop.f32.mrb[0].mxu0
    %v1535 = vadd.f32 %v1494, %v1534
    %v1536 = vpop.f32.mrb[0].mxu0
    %v1537 = vpop.f32.mrb[0].mxu0
    %1538 = vdwg.mxu0
    %v1539 = vmax.f32 %v1369, 0.0
    %v1540 = vmax.f32 %v1371, 0.0
    %v1541 = vmax.f32 %v1451, 0.0
    %v1542 = vmax.f32 %v1453, 0.0
    %v1543 = vmax.f32 %v1533, 0.0
    %v1544 = vmax.f32 %v1535, 0.0
    %v1545 = vmax.f32 %v1539, %v1542
    %v1546 = vmax.f32 %v1540, %v1543
    %v1547 = vmax.f32 %v1541, %v1544
    %v1548 = vpack.c.bf16 %v1545, %v1545
    %v1549 = vpack.c.bf16 %v1546, %v1546
    %v1550 = vpack.c.bf16 %v1547, %v1547
    %v1551 = vld [vmem:[#allocation8] sm:$0xf]
    %v1552 = vld [vmem:[#allocation8 + $0x4] sm:$0xf]
    %v1553 = vld [vmem:[#allocation8 + $0x8] sm:$0xf]
    %v1554 = vld [vmem:[#allocation8 + $0xc] sm:$0xf]
    %v1555 = vld [vmem:[#allocation8 + $0x10] sm:$0xf]
    %v1556 = vld [vmem:[#allocation8 + $0x14] sm:$0xf]
    %v1557 = vld [vmem:[#allocation8 + $0x18] sm:$0xf]
    %v1558 = vld [vmem:[#allocation8 + $0x1c] sm:$0xf]
    %v1559 = vld [vmem:[#allocation8 + $0x20] sm:$0xf]
    %v1560 = vld [vmem:[#allocation8 + $0x24] sm:$0xf]
    %v1561 = vld [vmem:[#allocation8 + $0x28] sm:$0xf]
    %v1562 = vld [vmem:[#allocation8 + $0x2c] sm:$0xf]
    %v1563 = vld [vmem:[#allocation8 + $0x30] sm:$0xf]
    %v1564 = vld [vmem:[#allocation8 + $0x34] sm:$0xf]
    %v1565 = vld [vmem:[#allocation8 + $0x38] sm:$0xf]
    %v1566 = vld [vmem:[#allocation8 + $0x3c] sm:$0xf]
    %v1567 = vld [vmem:[#allocation8 + $0x40] sm:$0xf]
    %v1568 = vld [vmem:[#allocation8 + $0x44] sm:$0xf]
    %v1569 = vld [vmem:[#allocation8 + $0x48] sm:$0xf]
    %v1570 = vld [vmem:[#allocation8 + $0x4c] sm:$0xf]
    %v1571 = vld [vmem:[#allocation8 + $0x50] sm:$0xf]
    %v1572 = vld [vmem:[#allocation8 + $0x54] sm:$0xf]
    %v1573 = vld [vmem:[#allocation8 + $0x58] sm:$0xf]
    %v1574 = vld [vmem:[#allocation8 + $0x5c] sm:$0xf]
    %v1575 = vld [vmem:[#allocation8 + $0x60] sm:$0xf]
    %v1576 = vld [vmem:[#allocation8 + $0x64] sm:$0xf]
    %v1577 = vld [vmem:[#allocation8 + $0x68] sm:$0xf]
    %v1578 = vld [vmem:[#allocation8 + $0x6c] sm:$0xf]
    %v1579 = vld [vmem:[#allocation8 + $0x70] sm:$0xf]
    %v1580 = vld [vmem:[#allocation8 + $0x74] sm:$0xf]
    %v1581 = vld [vmem:[#allocation8 + $0x78] sm:$0xf]
    %v1582 = vld [vmem:[#allocation8 + $0x7c] sm:$0xf]
    %v1583 = vld [vmem:[#allocation8 + $0x80] sm:$0xf]
    %v1584 = vld [vmem:[#allocation8 + $0x84] sm:$0xf]
    %v1585 = vld [vmem:[#allocation8 + $0x88] sm:$0xf]
    %v1586 = vld [vmem:[#allocation8 + $0x8c] sm:$0xf]
    %v1587 = vld [vmem:[#allocation8 + $0x90] sm:$0xf]
    %v1588 = vld [vmem:[#allocation8 + $0x94] sm:$0xf]
    %v1589 = vld [vmem:[#allocation8 + $0x98] sm:$0xf]
    %v1590 = vld [vmem:[#allocation8 + $0x9c] sm:$0xf]
    %v1591 = vld [vmem:[#allocation8 + $0xa0] sm:$0xf]
    %v1592 = vld [vmem:[#allocation8 + $0xa4] sm:$0xf]
    %v1593 = vld [vmem:[#allocation8 + $0xa8] sm:$0xf]
    %v1594 = vld [vmem:[#allocation8 + $0xac] sm:$0xf]
    %v1595 = vld [vmem:[#allocation8 + $0xb0] sm:$0xf]
    %v1596 = vld [vmem:[#allocation8 + $0xb4] sm:$0xf]
    %v1597 = vld [vmem:[#allocation8 + $0xb8] sm:$0xf]
    %v1598 = vld [vmem:[#allocation8 + $0xbc] sm:$0xf]
    %v1599 = vld [vmem:[%s6] sm:$0x1]
    %v1601 = vlaneseq
    %v1602 = vshrl.u32 %v1601, 7
    %v1603 = vsub.s32 0, %v1602
    %v1604 = vrot.slane %v1599, %v1603
    %v1654 = vunpack.c.l.b16 %v1551
    %v1655 = vunpack.c.l.b16 %v1552
    %v1656 = vunpack.c.l.b16 %v1553
    %v1657 = vunpack.c.l.b16 %v1554
    %v1658 = vunpack.c.l.b16 %v1555
    %v1659 = vunpack.c.l.b16 %v1556
    %v1660 = vunpack.c.l.b16 %v1557
    %v1661 = vunpack.c.l.b16 %v1558
    %v1662 = vunpack.c.l.b16 %v1559
    %v1663 = vunpack.c.l.b16 %v1560
    %v1664 = vunpack.c.l.b16 %v1561
    %v1665 = vunpack.c.l.b16 %v1562
    %v1666 = vunpack.c.l.b16 %v1563
    %v1667 = vunpack.c.l.b16 %v1564
    %v1668 = vunpack.c.l.b16 %v1565
    %v1669 = vunpack.c.l.b16 %v1566
    %v1670 = vunpack.c.l.b16 %v1567
    %v1671 = vunpack.c.l.b16 %v1568
    %v1672 = vunpack.c.l.b16 %v1569
    %v1673 = vunpack.c.l.b16 %v1570
    %v1674 = vunpack.c.l.b16 %v1571
    %v1675 = vunpack.c.l.b16 %v1572
    %v1676 = vunpack.c.l.b16 %v1573
    %v1677 = vunpack.c.l.b16 %v1574
    %v1678 = vunpack.c.l.b16 %v1575
    %v1679 = vunpack.c.l.b16 %v1576
    %v1680 = vunpack.c.l.b16 %v1577
    %v1681 = vunpack.c.l.b16 %v1578
    %v1682 = vunpack.c.l.b16 %v1579
    %v1683 = vunpack.c.l.b16 %v1580
    %v1684 = vunpack.c.l.b16 %v1581
    %v1685 = vunpack.c.l.b16 %v1582
    %v1686 = vunpack.c.l.b16 %v1583
    %v1687 = vunpack.c.l.b16 %v1584
    %v1688 = vunpack.c.l.b16 %v1585
    %v1689 = vunpack.c.l.b16 %v1586
    %v1690 = vunpack.c.l.b16 %v1587
    %v1691 = vunpack.c.l.b16 %v1588
    %v1692 = vunpack.c.l.b16 %v1589
    %v1693 = vunpack.c.l.b16 %v1590
    %v1694 = vunpack.c.l.b16 %v1591
    %v1695 = vunpack.c.l.b16 %v1592
    %v1696 = vunpack.c.l.b16 %v1593
    %v1697 = vunpack.c.l.b16 %v1594
    %v1698 = vunpack.c.l.b16 %v1595
    %v1699 = vunpack.c.l.b16 %v1596
    %v1700 = vunpack.c.l.b16 %v1597
    %v1701 = vunpack.c.l.b16 %v1598
    %v1702 = vpack.c.b16 %v1655, %v1654
    %v1703 = vpack.c.b16 %v1657, %v1656
    %v1704 = vpack.c.b16 %v1659, %v1658
    %v1705 = vpack.c.b16 %v1661, %v1660
    %v1706 = vpack.c.b16 %v1663, %v1662
    %v1707 = vpack.c.b16 %v1665, %v1664
    %v1708 = vpack.c.b16 %v1667, %v1666
    %v1709 = vpack.c.b16 %v1669, %v1668
    %v1710 = vpack.c.b16 %v1671, %v1670
    %v1711 = vpack.c.b16 %v1673, %v1672
    %v1712 = vpack.c.b16 %v1675, %v1674
    %v1713 = vpack.c.b16 %v1677, %v1676
    %v1714 = vpack.c.b16 %v1679, %v1678
    %v1715 = vpack.c.b16 %v1681, %v1680
    %v1716 = vpack.c.b16 %v1683, %v1682
    %v1717 = vpack.c.b16 %v1685, %v1684
    %v1718 = vpack.c.b16 %v1687, %v1686
    %v1719 = vpack.c.b16 %v1689, %v1688
    %v1720 = vpack.c.b16 %v1691, %v1690
    %v1721 = vpack.c.b16 %v1693, %v1692
    %v1722 = vpack.c.b16 %v1695, %v1694
    %v1723 = vpack.c.b16 %v1697, %v1696
    %v1724 = vpack.c.b16 %v1699, %v1698
    %v1725 = vpack.c.b16 %v1701, %v1700
    %1750 = vmatprep.subr.bf16.mxu0 0
    %1751 = vmatpush1.bf16.msra.mxu0 %v1702
    %1752 = vmatprep.subr.bf16.mxu0 0
    %1753 = vmatpush1.bf16.msra.mxu0 %v1703
    %1754 = vmatprep.subr.bf16.mxu0 0
    %1755 = vmatpush1.bf16.msra.mxu0 %v1704
    %1756 = vmatprep.subr.bf16.mxu0 0
    %1757 = vmatpush1.bf16.msra.mxu0 %v1705
    %1758 = vmatprep.subr.bf16.mxu0 0
    %1759 = vmatpush1.bf16.msra.mxu0 %v1706
    %1760 = vmatprep.subr.bf16.mxu0 0
    %1761 = vmatpush1.bf16.msra.mxu0 %v1707
    %1762 = vmatprep.subr.bf16.mxu0 0
    %1763 = vmatpush1.bf16.msra.mxu0 %v1708
    %1764 = vmatprep.subr.bf16.mxu0 0
    %1765 = vmatpush1.bf16.msra.mxu0 %v1709
    %1766 = vmatprep.subr.bf16.mxu0 0
    %1767 = vmatpush1.bf16.msra.mxu0 %v1710
    %1768 = vmatprep.subr.bf16.mxu0 0
    %1769 = vmatpush1.bf16.msra.mxu0 %v1711
    %1770 = vmatprep.subr.bf16.mxu0 0
    %1771 = vmatpush1.bf16.msra.mxu0 %v1712
    %1772 = vmatprep.subr.bf16.mxu0 0
    %1773 = vmatpush1.bf16.msra.mxu0 %v1713
    %1774 = vmatprep.subr.bf16.mxu0 0
    %1775 = vmatpush1.bf16.msra.mxu0 %v1714
    %1776 = vmatprep.subr.bf16.mxu0 0
    %1777 = vmatpush1.bf16.msra.mxu0 %v1715
    %1778 = vmatprep.subr.bf16.mxu0 0
    %1779 = vmatpush1.bf16.msra.mxu0 %v1716
    %1780 = vmatprep.subr.bf16.mxu0 0
    %1781 = vmatpush1.bf16.msra.mxu0 %v1717
    %1782 = vmatprep.mubr.bf16.mxu0 %v1549
    %1783 = vmatmul.mubr.bf16.gmra.mrb[0].mxu0 %v1548
    %v1784 = vpop.f32.mrb[0].mxu0
    %v1785 = vadd.f32 %v1604, %v1784
    %v1786 = vpop.f32.mrb[0].mxu0
    %v1787 = vpop.f32.mrb[0].mxu0
    %v1788 = vpop.f32.mrb[0].mxu0
    %1789 = vdwg.mxu0
    %1790 = vmatprep.subr.bf16.mxu0 0
    %1791 = vmatpush1.bf16.msra.mxu0 %v1718
    %1792 = vmatprep.subr.bf16.mxu0 0
    %1793 = vmatpush1.bf16.msra.mxu0 %v1719
    %1794 = vmatprep.subr.bf16.mxu0 0
    %1795 = vmatpush1.bf16.msra.mxu0 %v1720
    %1796 = vmatprep.subr.bf16.mxu0 0
    %1797 = vmatpush1.bf16.msra.mxu0 %v1721
    %1798 = vmatprep.subr.bf16.mxu0 0
    %1799 = vmatpush1.bf16.msra.mxu0 %v1722
    %1800 = vmatprep.subr.bf16.mxu0 0
    %1801 = vmatpush1.bf16.msra.mxu0 %v1723
    %1802 = vmatprep.subr.bf16.mxu0 0
    %1803 = vmatpush1.bf16.msra.mxu0 %v1724
    %1804 = vmatprep.subr.bf16.mxu0 0
    %1805 = vmatpush1.bf16.msra.mxu0 %v1725
    %1806 = vmatprep.subr.bf16.mxu0 0
    %1807 = vmatpush1.bf16.msra.mxu0 0
    %1808 = vmatprep.subr.bf16.mxu0 0
    %1809 = vmatpush1.bf16.msra.mxu0 0
    %1810 = vmatprep.subr.bf16.mxu0 0
    %1811 = vmatpush1.bf16.msra.mxu0 0
    %1812 = vmatprep.subr.bf16.mxu0 0
    %1813 = vmatpush1.bf16.msra.mxu0 0
    %1814 = vmatprep.subr.bf16.mxu0 0
    %1815 = vmatpush1.bf16.msra.mxu0 0
    %1816 = vmatprep.subr.bf16.mxu0 0
    %1817 = vmatpush1.bf16.msra.mxu0 0
    %1818 = vmatprep.subr.bf16.mxu0 0
    %1819 = vmatpush1.bf16.msra.mxu0 0
    %1820 = vmatprep.subr.bf16.mxu0 0
    %1821 = vmatpush1.bf16.msra.mxu0 0
    %1822 = vmatprep.mubr.bf16.mxu0 0
    %1823 = vmatmul.mubr.bf16.gmra.mrb[0].mxu0 %v1550
    %v1824 = vpop.f32.mrb[0].mxu0
    %v1825 = vadd.f32 %v1785, %v1824
    %v1826 = vpop.f32.mrb[0].mxu0
    %v1827 = vpop.f32.mrb[0].mxu0
    %v1828 = vpop.f32.mrb[0].mxu0
    %1829 = vdwg.mxu0
    %1830 = vst [vmem:[#allocation10] sm:$0xff] %v1825
    // Predicated region
    $region46: #{tpu_custom_call.1} parent=1 // pred_check
      _
    $region47: #{tpu_custom_call.1} parent=1 // pred_check_branch
      %1832 = sbr.rel (0) target = $region49
    $region48: #{tpu_custom_call.1} parent=1 // pred_region
      %s1834 = ssub.s32 128, 128
      %1835 = vsyncadd [#allocation4], %s1834
      %s1837 = sshll.u32 [#allocation10], 4
      %s1838 = int_to_ptr.vmem [resolvable:$true] %s1837
      %1840 = dma.vmem_to_hbm [thread:$0]  %s1838, 128, %s7, [#allocation4]
    $region49: #{tpu_custom_call.1} parent=1 // pred_fallthru
      _
    // Predicated region
    $region50: #{tpu_custom_call.1} parent=1 // pred_check
      _
    $region51: #{tpu_custom_call.1} parent=1 // pred_check_branch
      %1842 = sbr.rel (0) target = $region53
    $region52: #{tpu_custom_call.1} parent=1 // pred_region
      %1843 = dma.done [#allocation4], 128
    $region53: #{tpu_custom_call.1} parent=1 // pred_fallthru
      _
    %1844 = vsyncpa [#allocation3], 1
    %1845 = vsyncpa [#allocation6], 1
    %1846 = vsyncpa [#allocation9], 1
    %1847 = vsyncpa [#allocation4], 1

</llo_original>
